<compile_context>
chip_gen: v7x
topology: tpu7x:2x2x1
jax: 0.10.0
libtpu: 0.0.40
codegen_flags: <defaults>
</compile_context>

<pallas_src>
import jax
import jax.numpy as jnp
from jax.experimental import pallas as pl

# ---------------- configuration (small, consistent with the module) ---------
BATCH = 2
T_Q = 8
T_KV = 8
DIM = 32
NUM_HEADS = 4
HEAD_DIM = DIM // NUM_HEADS
LN_EPS = 1e-5

SLAB_ROWS = 40           # >= DIM + 4, rounded up to a multiple of 8 sublanes
SLAB_LANES = 4 * DIM     # [Wq|Wk|Wv|Wo] across 128 lanes


# ---------------------------- Pallas kernel ---------------------------------
def mhca_kernel(q_ref, k_ref, v_ref, slab_ref, o_ref):
    # Static carving of the single packed parameter slab (zero-cost ref views).
    w_in = slab_ref[0:DIM, 0:3 * DIM]             # [Wq | Wk | Wv]   (32, 96)
    w_o = slab_ref[0:DIM, 3 * DIM:4 * DIM]        # Wo               (32, 32)
    b_in = slab_ref[DIM:DIM + 1, 0:3 * DIM]       # [bq | bk | bv]   (1, 96)
    gamma = slab_ref[DIM + 1:DIM + 2, 0:DIM]      # (1, 32)
    beta = slab_ref[DIM + 2:DIM + 3, 0:DIM]       # (1, 32)
    b_o = slab_ref[DIM + 3:DIM + 4, 0:DIM]        # (1, 32)

    rq = BATCH * T_Q
    rkv = BATCH * T_KV

    # Batch folded into rows (free reshapes: last dim unchanged, 8-row blocks).
    q_rows = q_ref[...].reshape(rq, DIM).astype(jnp.float32)    # (16, 32)
    k_rows = k_ref[...].reshape(rkv, DIM).astype(jnp.float32)   # (16, 32)
    v_rows = v_ref[...].reshape(rkv, DIM).astype(jnp.float32)   # (16, 32)

    # LayerNorm over the feature dim of q (all batches at once).
    mean = jnp.mean(q_rows, axis=-1, keepdims=True)
    cent = q_rows - mean
    var = jnp.mean(cent * cent, axis=-1, keepdims=True)
    qn = cent * jax.lax.rsqrt(var + LN_EPS) * gamma + beta       # (16, 32)

    # Fused Q/K/V projections: one MXU matmul on row-stacked inputs against the
    # lane-fused weight block.  Only the diagonal (input block, weight block)
    # tiles of the (48, 96) result are read; the bias row is broadcast-added to
    # everything and the unused off-diagonal tiles are simply never consumed.
    x = jnp.concatenate([qn, k_rows, v_rows], axis=0)            # (48, 32)
    proj = jnp.dot(x, w_in, preferred_element_type=jnp.float32) + b_in  # (48, 96)

    scale = HEAD_DIM ** (-0.5)
    q_base, k_base, v_base = 0, rq, rq + rkv

    # Heads/batches only matter for the tiny 8x8 score/softmax/PV step.
    out_batches = []
    for b in range(BATCH):                     # static, 2 iterations
        head_outs = []
        for h in range(NUM_HEADS):             # static, 4 iterations
            lo = h * HEAD_DIM
            hi = lo + HEAD_DIM
            q_h = proj[q_base + b * T_Q:q_base + (b + 1) * T_Q, lo:hi]            # (8, 8)
            k_h = proj[k_base + b * T_KV:k_base + (b + 1) * T_KV,
                       DIM + lo:DIM + hi]                                          # (8, 8)
            v_h = proj[v_base + b * T_KV:v_base + (b + 1) * T_KV,
                       2 * DIM + lo:2 * DIM + hi]                                  # (8, 8)

            # q_h @ k_h^T without materializing a transpose.
            s = jax.lax.dot_general(q_h, k_h, (((1,), (1,)), ((), ())),
                                    preferred_element_type=jnp.float32) * scale    # (8, 8)
            m = jnp.max(s, axis=-1, keepdims=True)
            e = jnp.exp(s - m)
            p = e / jnp.sum(e, axis=-1, keepdims=True)   # exact normalization
            head_outs.append(jnp.dot(p, v_h, preferred_element_type=jnp.float32))  # (8, 8)
        out_batches.append(jnp.concatenate(head_outs, axis=1))   # (8, 32)

    attn_rows = jnp.concatenate(out_batches, axis=0)             # (16, 32)

    # Output projection: single 2-D MXU matmul.
    out = jnp.dot(attn_rows, w_o, preferred_element_type=jnp.float32) + b_o  # (16, 32)
    o_ref[...] = out.reshape(BATCH, T_Q, DIM).astype(o_ref.dtype)


# ------------------------------ wrapper --------------------------------------
@jax.jit
def mhca_pallas(q, k, v, slab):
    B, t_q, d = q.shape
    # Grid-less, single-shot pallas_call: whole (tiny) working set in VMEM,
    # no grid-loop prologue, 4 input DMAs + 1 output DMA total.
    return pl.pallas_call(
        mhca_kernel,
        out_shape=jax.ShapeDtypeStruct((B, t_q, d), q.dtype),
    )(q, k, v, slab)


# ------------------- one-time parameter packing (host side) ------------------
def pack_params(params):
    """Pack all weights / biases / LN params into one (40, 128) f32 slab.

    Done ONCE outside the jitted call path (no per-call repacking ops).
    """
    d = DIM
    slab = jnp.zeros((SLAB_ROWS, SLAB_LANES), jnp.float32)
    w_all = jnp.concatenate(
        [params["wq"], params["wk"], params["wv"], params["wo"]], axis=1)  # (32, 128)
    slab = slab.at[0:d, :].set(w_all)
    b_in = jnp.concatenate(
        [params["bq"][0], params["bk"][0], params["bv"][0]], axis=0)       # (96,)
    slab = slab.at[d, 0:3 * d].set(b_in)
    slab = slab.at[d + 1, 0:d].set(params["gamma"][0])
    slab = slab.at[d + 2, 0:d].set(params["beta"][0])
    slab = slab.at[d + 3, 0:d].set(params["bo"][0])
    return slab


# ------------------------- pure-JAX reference --------------------------------
def mhca_reference(q, k, v, params):
    B, t_q, d = q.shape
    _, t_kv, _ = k.shape
    mean = jnp.mean(q, axis=-1, keepdims=True)
    var = jnp.mean((q - mean) ** 2, axis=-1, keepdims=True)
    qn = (q - mean) / jnp.sqrt(var + LN_EPS)
    qn = qn * params["gamma"][0] + params["beta"][0]

    q_lin = qn @ params["wq"] + params["bq"][0]
    k_lin = k @ params["wk"] + params["bk"][0]
    v_lin = v @ params["wv"] + params["bv"][0]

    def to_heads(x, t):
        return x.reshape(B, t, NUM_HEADS, HEAD_DIM).transpose(0, 2, 1, 3)

    qh = to_heads(q_lin, t_q)
    kh = to_heads(k_lin, t_kv)
    vh = to_heads(v_lin, t_kv)

    scores = jnp.einsum("bhqd,bhkd->bhqk", qh, kh) * (HEAD_DIM ** -0.5)
    p = jax.nn.softmax(scores, axis=-1)
    out = jnp.einsum("bhqk,bhkd->bhqd", p, vh)
    out = out.transpose(0, 2, 1, 3).reshape(B, t_q, d)
    return out @ params["wo"] + params["bo"][0]


# ---------------------------- param init -------------------------------------
def init_params(key, dim):
    keys = jax.random.split(key, 8)
    scale = 0.02
    return {
        "wq": scale * jax.random.normal(keys[0], (dim, dim), jnp.float32),
        "bq": scale * jax.random.normal(keys[1], (1, dim), jnp.float32),
        "wk": scale * jax.random.normal(keys[2], (dim, dim), jnp.float32),
        "bk": scale * jax.random.normal(keys[3], (1, dim), jnp.float32),
        "wv": scale * jax.random.normal(keys[4], (dim, dim), jnp.float32),
        "bv": scale * jax.random.normal(keys[5], (1, dim), jnp.float32),
        "wo": scale * jax.random.normal(keys[6], (dim, dim), jnp.float32),
        "bo": scale * jax.random.normal(keys[7], (1, dim), jnp.float32),
        "gamma": jnp.ones((1, dim), jnp.float32),
        "beta": jnp.zeros((1, dim), jnp.float32),
    }


if __name__ == "__main__":
    key = jax.random.PRNGKey(0)
    kq, kk, kv, kp = jax.random.split(key, 4)

    q = jax.random.normal(kq, (BATCH, T_Q, DIM), jnp.float32)
    k = jax.random.normal(kk, (BATCH, T_KV, DIM), jnp.float32)
    v = jax.random.normal(kv, (BATCH, T_KV, DIM), jnp.float32)
    params = init_params(kp, DIM)

    slab = jax.block_until_ready(pack_params(params))   # one-time packing

    out = mhca_pallas(q, k, v, slab)
    jax.block_until_ready(out)

    ref = mhca_reference(q, k, v, params)
    assert out.shape == (BATCH, T_Q, DIM)
    # Exact softmax normalization restored -> tight tolerance again.
    assert jnp.allclose(out, ref, atol=1e-4, rtol=1e-4), "mismatch vs reference"

    print("KERNEL_OK")
</pallas_src>

<mosaic_0001>
module attributes {stable_mosaic.version = 11 : i64} {
  func.func @mhca_kernel(%arg0: memref<2x8x32xf32, #tpu.memory_space<vmem>>, %arg1: memref<2x8x32xf32, #tpu.memory_space<vmem>>, %arg2: memref<2x8x32xf32, #tpu.memory_space<vmem>>, %arg3: memref<40x128xf32, #tpu.memory_space<vmem>>, %arg4: memref<2x8x32xf32, #tpu.memory_space<vmem>>) attributes {dimension_semantics = [], scalar_prefetch = 0 : i64, scratch_operands = 0 : i64, tpu.core_type = #tpu.core_type<tc>} {
    %c0 = arith.constant 0 : index
    %c0_0 = arith.constant 0 : index
    %0 = vector.load %arg3[%c0, %c0_0] : memref<40x128xf32, #tpu.memory_space<vmem>>, vector<32x96xf32>
    %c0_1 = arith.constant 0 : index
    %c96 = arith.constant 96 : index
    %1 = vector.load %arg3[%c0_1, %c96] : memref<40x128xf32, #tpu.memory_space<vmem>>, vector<32x32xf32>
    %c32 = arith.constant 32 : index
    %c0_2 = arith.constant 0 : index
    %2 = vector.load %arg3[%c32, %c0_2] : memref<40x128xf32, #tpu.memory_space<vmem>>, vector<1x96xf32>
    %c33 = arith.constant 33 : index
    %c0_3 = arith.constant 0 : index
    %3 = vector.load %arg3[%c33, %c0_3] : memref<40x128xf32, #tpu.memory_space<vmem>>, vector<1x32xf32>
    %c34 = arith.constant 34 : index
    %c0_4 = arith.constant 0 : index
    %4 = vector.load %arg3[%c34, %c0_4] : memref<40x128xf32, #tpu.memory_space<vmem>>, vector<1x32xf32>
    %c35 = arith.constant 35 : index
    %c0_5 = arith.constant 0 : index
    %5 = vector.load %arg3[%c35, %c0_5] : memref<40x128xf32, #tpu.memory_space<vmem>>, vector<1x32xf32>
    %c0_6 = arith.constant 0 : index
    %c0_7 = arith.constant 0 : index
    %c0_8 = arith.constant 0 : index
    %6 = vector.load %arg0[%c0_6, %c0_7, %c0_8] : memref<2x8x32xf32, #tpu.memory_space<vmem>>, vector<2x8x32xf32>
    %7 = vector.shape_cast %6 : vector<2x8x32xf32> to vector<16x32xf32>
    %c0_9 = arith.constant 0 : index
    %c0_10 = arith.constant 0 : index
    %c0_11 = arith.constant 0 : index
    %8 = vector.load %arg1[%c0_9, %c0_10, %c0_11] : memref<2x8x32xf32, #tpu.memory_space<vmem>>, vector<2x8x32xf32>
    %9 = vector.shape_cast %8 : vector<2x8x32xf32> to vector<16x32xf32>
    %c0_12 = arith.constant 0 : index
    %c0_13 = arith.constant 0 : index
    %c0_14 = arith.constant 0 : index
    %10 = vector.load %arg2[%c0_12, %c0_13, %c0_14] : memref<2x8x32xf32, #tpu.memory_space<vmem>>, vector<2x8x32xf32>
    %11 = vector.shape_cast %10 : vector<2x8x32xf32> to vector<16x32xf32>
    %cst = arith.constant dense<0.000000e+00> : vector<16xf32>
    %12 = vector.multi_reduction <add>, %7, %cst [1] : vector<16x32xf32> to vector<16xf32>
    %13 = vector.shape_cast %12 : vector<16xf32> to vector<16x1xf32>
    %cst_15 = arith.constant 3.200000e+01 : f32
    %14 = vector.broadcast %cst_15 : f32 to vector<16x1xf32>
    %15 = arith.divf %13, %14 : vector<16x1xf32>
    %16 = vector.broadcast %15 : vector<16x1xf32> to vector<16x32xf32>
    %17 = arith.subf %7, %16 : vector<16x32xf32>
    %18 = arith.mulf %17, %17 : vector<16x32xf32>
    %cst_16 = arith.constant dense<0.000000e+00> : vector<16xf32>
    %19 = vector.multi_reduction <add>, %18, %cst_16 [1] : vector<16x32xf32> to vector<16xf32>
    %20 = vector.shape_cast %19 : vector<16xf32> to vector<16x1xf32>
    %cst_17 = arith.constant 3.200000e+01 : f32
    %21 = vector.broadcast %cst_17 : f32 to vector<16x1xf32>
    %22 = arith.divf %20, %21 : vector<16x1xf32>
    %cst_18 = arith.constant 9.99999974E-6 : f32
    %23 = vector.broadcast %cst_18 : f32 to vector<16x1xf32>
    %24 = arith.addf %22, %23 : vector<16x1xf32>
    %25 = math.rsqrt %24 : vector<16x1xf32>
    %26 = vector.broadcast %25 : vector<16x1xf32> to vector<16x32xf32>
    %27 = arith.mulf %17, %26 : vector<16x32xf32>
    %28 = vector.broadcast %3 : vector<1x32xf32> to vector<16x32xf32>
    %29 = arith.mulf %27, %28 : vector<16x32xf32>
    %30 = vector.broadcast %4 : vector<1x32xf32> to vector<16x32xf32>
    %31 = arith.addf %29, %30 : vector<16x32xf32>
    %32 = tpu.concatenate %31, %9, %11 in 0 : vector<16x32xf32>, vector<16x32xf32>, vector<16x32xf32> -> vector<48x32xf32>
    %cst_19 = arith.constant dense<0.000000e+00> : vector<48x96xf32>
    %33 = tpu.matmul %32, %0, %cst_19 {dimension_numbers = #tpu.dot_dimension_numbers<[1], [0], [0], [1], [0, 0, 1, 1], [], []>} : vector<48x32xf32>, vector<32x96xf32>, vector<48x96xf32> -> vector<48x96xf32>
    %34 = vector.broadcast %2 : vector<1x96xf32> to vector<48x96xf32>
    %35 = arith.addf %33, %34 : vector<48x96xf32>
    %36 = vector.extract_strided_slice %35 {offsets = [0, 0], sizes = [8, 8], strides = [1, 1]} : vector<48x96xf32> to vector<8x8xf32>
    %37 = vector.extract_strided_slice %35 {offsets = [16, 32], sizes = [8, 8], strides = [1, 1]} : vector<48x96xf32> to vector<8x8xf32>
    %38 = vector.extract_strided_slice %35 {offsets = [32, 64], sizes = [8, 8], strides = [1, 1]} : vector<48x96xf32> to vector<8x8xf32>
    %cst_20 = arith.constant dense<0.000000e+00> : vector<8x8xf32>
    %39 = tpu.matmul %36, %37, %cst_20 {dimension_numbers = #tpu.dot_dimension_numbers<[1], [1], [0], [0], [0, 0, 1, 0], [], []>} : vector<8x8xf32>, vector<8x8xf32>, vector<8x8xf32> -> vector<8x8xf32>
    %cst_21 = arith.constant 0.353553385 : f32
    %40 = vector.broadcast %cst_21 : f32 to vector<8x8xf32>
    %41 = arith.mulf %39, %40 : vector<8x8xf32>
    %cst_22 = arith.constant dense<0xFF800000> : vector<8xf32>
    %42 = vector.multi_reduction <maximumf>, %41, %cst_22 [1] : vector<8x8xf32> to vector<8xf32>
    %43 = vector.shape_cast %42 : vector<8xf32> to vector<8x1xf32>
    %44 = vector.broadcast %43 : vector<8x1xf32> to vector<8x8xf32>
    %45 = arith.subf %41, %44 : vector<8x8xf32>
    %46 = math.exp %45 : vector<8x8xf32>
    %cst_23 = arith.constant dense<0.000000e+00> : vector<8xf32>
    %47 = vector.multi_reduction <add>, %46, %cst_23 [1] : vector<8x8xf32> to vector<8xf32>
    %48 = vector.shape_cast %47 : vector<8xf32> to vector<8x1xf32>
    %49 = vector.broadcast %48 : vector<8x1xf32> to vector<8x8xf32>
    %50 = arith.divf %46, %49 : vector<8x8xf32>
    %cst_24 = arith.constant dense<0.000000e+00> : vector<8x8xf32>
    %51 = tpu.matmul %50, %38, %cst_24 {dimension_numbers = #tpu.dot_dimension_numbers<[1], [0], [0], [1], [0, 0, 1, 1], [], []>} : vector<8x8xf32>, vector<8x8xf32>, vector<8x8xf32> -> vector<8x8xf32>
    %52 = vector.extract_strided_slice %35 {offsets = [0, 8], sizes = [8, 8], strides = [1, 1]} : vector<48x96xf32> to vector<8x8xf32>
    %53 = vector.extract_strided_slice %35 {offsets = [16, 40], sizes = [8, 8], strides = [1, 1]} : vector<48x96xf32> to vector<8x8xf32>
    %54 = vector.extract_strided_slice %35 {offsets = [32, 72], sizes = [8, 8], strides = [1, 1]} : vector<48x96xf32> to vector<8x8xf32>
    %cst_25 = arith.constant dense<0.000000e+00> : vector<8x8xf32>
    %55 = tpu.matmul %52, %53, %cst_25 {dimension_numbers = #tpu.dot_dimension_numbers<[1], [1], [0], [0], [0, 0, 1, 0], [], []>} : vector<8x8xf32>, vector<8x8xf32>, vector<8x8xf32> -> vector<8x8xf32>
    %cst_26 = arith.constant 0.353553385 : f32
    %56 = vector.broadcast %cst_26 : f32 to vector<8x8xf32>
    %57 = arith.mulf %55, %56 : vector<8x8xf32>
    %cst_27 = arith.constant dense<0xFF800000> : vector<8xf32>
    %58 = vector.multi_reduction <maximumf>, %57, %cst_27 [1] : vector<8x8xf32> to vector<8xf32>
    %59 = vector.shape_cast %58 : vector<8xf32> to vector<8x1xf32>
    %60 = vector.broadcast %59 : vector<8x1xf32> to vector<8x8xf32>
    %61 = arith.subf %57, %60 : vector<8x8xf32>
    %62 = math.exp %61 : vector<8x8xf32>
    %cst_28 = arith.constant dense<0.000000e+00> : vector<8xf32>
    %63 = vector.multi_reduction <add>, %62, %cst_28 [1] : vector<8x8xf32> to vector<8xf32>
    %64 = vector.shape_cast %63 : vector<8xf32> to vector<8x1xf32>
    %65 = vector.broadcast %64 : vector<8x1xf32> to vector<8x8xf32>
    %66 = arith.divf %62, %65 : vector<8x8xf32>
    %cst_29 = arith.constant dense<0.000000e+00> : vector<8x8xf32>
    %67 = tpu.matmul %66, %54, %cst_29 {dimension_numbers = #tpu.dot_dimension_numbers<[1], [0], [0], [1], [0, 0, 1, 1], [], []>} : vector<8x8xf32>, vector<8x8xf32>, vector<8x8xf32> -> vector<8x8xf32>
    %68 = vector.extract_strided_slice %35 {offsets = [0, 16], sizes = [8, 8], strides = [1, 1]} : vector<48x96xf32> to vector<8x8xf32>
    %69 = vector.extract_strided_slice %35 {offsets = [16, 48], sizes = [8, 8], strides = [1, 1]} : vector<48x96xf32> to vector<8x8xf32>
    %70 = vector.extract_strided_slice %35 {offsets = [32, 80], sizes = [8, 8], strides = [1, 1]} : vector<48x96xf32> to vector<8x8xf32>
    %cst_30 = arith.constant dense<0.000000e+00> : vector<8x8xf32>
    %71 = tpu.matmul %68, %69, %cst_30 {dimension_numbers = #tpu.dot_dimension_numbers<[1], [1], [0], [0], [0, 0, 1, 0], [], []>} : vector<8x8xf32>, vector<8x8xf32>, vector<8x8xf32> -> vector<8x8xf32>
    %cst_31 = arith.constant 0.353553385 : f32
    %72 = vector.broadcast %cst_31 : f32 to vector<8x8xf32>
    %73 = arith.mulf %71, %72 : vector<8x8xf32>
    %cst_32 = arith.constant dense<0xFF800000> : vector<8xf32>
    %74 = vector.multi_reduction <maximumf>, %73, %cst_32 [1] : vector<8x8xf32> to vector<8xf32>
    %75 = vector.shape_cast %74 : vector<8xf32> to vector<8x1xf32>
    %76 = vector.broadcast %75 : vector<8x1xf32> to vector<8x8xf32>
    %77 = arith.subf %73, %76 : vector<8x8xf32>
    %78 = math.exp %77 : vector<8x8xf32>
    %cst_33 = arith.constant dense<0.000000e+00> : vector<8xf32>
    %79 = vector.multi_reduction <add>, %78, %cst_33 [1] : vector<8x8xf32> to vector<8xf32>
    %80 = vector.shape_cast %79 : vector<8xf32> to vector<8x1xf32>
    %81 = vector.broadcast %80 : vector<8x1xf32> to vector<8x8xf32>
    %82 = arith.divf %78, %81 : vector<8x8xf32>
    %cst_34 = arith.constant dense<0.000000e+00> : vector<8x8xf32>
    %83 = tpu.matmul %82, %70, %cst_34 {dimension_numbers = #tpu.dot_dimension_numbers<[1], [0], [0], [1], [0, 0, 1, 1], [], []>} : vector<8x8xf32>, vector<8x8xf32>, vector<8x8xf32> -> vector<8x8xf32>
    %84 = vector.extract_strided_slice %35 {offsets = [0, 24], sizes = [8, 8], strides = [1, 1]} : vector<48x96xf32> to vector<8x8xf32>
    %85 = vector.extract_strided_slice %35 {offsets = [16, 56], sizes = [8, 8], strides = [1, 1]} : vector<48x96xf32> to vector<8x8xf32>
    %86 = vector.extract_strided_slice %35 {offsets = [32, 88], sizes = [8, 8], strides = [1, 1]} : vector<48x96xf32> to vector<8x8xf32>
    %cst_35 = arith.constant dense<0.000000e+00> : vector<8x8xf32>
    %87 = tpu.matmul %84, %85, %cst_35 {dimension_numbers = #tpu.dot_dimension_numbers<[1], [1], [0], [0], [0, 0, 1, 0], [], []>} : vector<8x8xf32>, vector<8x8xf32>, vector<8x8xf32> -> vector<8x8xf32>
    %cst_36 = arith.constant 0.353553385 : f32
    %88 = vector.broadcast %cst_36 : f32 to vector<8x8xf32>
    %89 = arith.mulf %87, %88 : vector<8x8xf32>
    %cst_37 = arith.constant dense<0xFF800000> : vector<8xf32>
    %90 = vector.multi_reduction <maximumf>, %89, %cst_37 [1] : vector<8x8xf32> to vector<8xf32>
    %91 = vector.shape_cast %90 : vector<8xf32> to vector<8x1xf32>
    %92 = vector.broadcast %91 : vector<8x1xf32> to vector<8x8xf32>
    %93 = arith.subf %89, %92 : vector<8x8xf32>
    %94 = math.exp %93 : vector<8x8xf32>
    %cst_38 = arith.constant dense<0.000000e+00> : vector<8xf32>
    %95 = vector.multi_reduction <add>, %94, %cst_38 [1] : vector<8x8xf32> to vector<8xf32>
    %96 = vector.shape_cast %95 : vector<8xf32> to vector<8x1xf32>
    %97 = vector.broadcast %96 : vector<8x1xf32> to vector<8x8xf32>
    %98 = arith.divf %94, %97 : vector<8x8xf32>
    %cst_39 = arith.constant dense<0.000000e+00> : vector<8x8xf32>
    %99 = tpu.matmul %98, %86, %cst_39 {dimension_numbers = #tpu.dot_dimension_numbers<[1], [0], [0], [1], [0, 0, 1, 1], [], []>} : vector<8x8xf32>, vector<8x8xf32>, vector<8x8xf32> -> vector<8x8xf32>
    %100 = tpu.concatenate %51, %67, %83, %99 in 1 : vector<8x8xf32>, vector<8x8xf32>, vector<8x8xf32>, vector<8x8xf32> -> vector<8x32xf32>
    %101 = vector.extract_strided_slice %35 {offsets = [8, 0], sizes = [8, 8], strides = [1, 1]} : vector<48x96xf32> to vector<8x8xf32>
    %102 = vector.extract_strided_slice %35 {offsets = [24, 32], sizes = [8, 8], strides = [1, 1]} : vector<48x96xf32> to vector<8x8xf32>
    %103 = vector.extract_strided_slice %35 {offsets = [40, 64], sizes = [8, 8], strides = [1, 1]} : vector<48x96xf32> to vector<8x8xf32>
    %cst_40 = arith.constant dense<0.000000e+00> : vector<8x8xf32>
    %104 = tpu.matmul %101, %102, %cst_40 {dimension_numbers = #tpu.dot_dimension_numbers<[1], [1], [0], [0], [0, 0, 1, 0], [], []>} : vector<8x8xf32>, vector<8x8xf32>, vector<8x8xf32> -> vector<8x8xf32>
    %cst_41 = arith.constant 0.353553385 : f32
    %105 = vector.broadcast %cst_41 : f32 to vector<8x8xf32>
    %106 = arith.mulf %104, %105 : vector<8x8xf32>
    %cst_42 = arith.constant dense<0xFF800000> : vector<8xf32>
    %107 = vector.multi_reduction <maximumf>, %106, %cst_42 [1] : vector<8x8xf32> to vector<8xf32>
    %108 = vector.shape_cast %107 : vector<8xf32> to vector<8x1xf32>
    %109 = vector.broadcast %108 : vector<8x1xf32> to vector<8x8xf32>
    %110 = arith.subf %106, %109 : vector<8x8xf32>
    %111 = math.exp %110 : vector<8x8xf32>
    %cst_43 = arith.constant dense<0.000000e+00> : vector<8xf32>
    %112 = vector.multi_reduction <add>, %111, %cst_43 [1] : vector<8x8xf32> to vector<8xf32>
    %113 = vector.shape_cast %112 : vector<8xf32> to vector<8x1xf32>
    %114 = vector.broadcast %113 : vector<8x1xf32> to vector<8x8xf32>
    %115 = arith.divf %111, %114 : vector<8x8xf32>
    %cst_44 = arith.constant dense<0.000000e+00> : vector<8x8xf32>
    %116 = tpu.matmul %115, %103, %cst_44 {dimension_numbers = #tpu.dot_dimension_numbers<[1], [0], [0], [1], [0, 0, 1, 1], [], []>} : vector<8x8xf32>, vector<8x8xf32>, vector<8x8xf32> -> vector<8x8xf32>
    %117 = vector.extract_strided_slice %35 {offsets = [8, 8], sizes = [8, 8], strides = [1, 1]} : vector<48x96xf32> to vector<8x8xf32>
    %118 = vector.extract_strided_slice %35 {offsets = [24, 40], sizes = [8, 8], strides = [1, 1]} : vector<48x96xf32> to vector<8x8xf32>
    %119 = vector.extract_strided_slice %35 {offsets = [40, 72], sizes = [8, 8], strides = [1, 1]} : vector<48x96xf32> to vector<8x8xf32>
    %cst_45 = arith.constant dense<0.000000e+00> : vector<8x8xf32>
    %120 = tpu.matmul %117, %118, %cst_45 {dimension_numbers = #tpu.dot_dimension_numbers<[1], [1], [0], [0], [0, 0, 1, 0], [], []>} : vector<8x8xf32>, vector<8x8xf32>, vector<8x8xf32> -> vector<8x8xf32>
    %cst_46 = arith.constant 0.353553385 : f32
    %121 = vector.broadcast %cst_46 : f32 to vector<8x8xf32>
    %122 = arith.mulf %120, %121 : vector<8x8xf32>
    %cst_47 = arith.constant dense<0xFF800000> : vector<8xf32>
    %123 = vector.multi_reduction <maximumf>, %122, %cst_47 [1] : vector<8x8xf32> to vector<8xf32>
    %124 = vector.shape_cast %123 : vector<8xf32> to vector<8x1xf32>
    %125 = vector.broadcast %124 : vector<8x1xf32> to vector<8x8xf32>
    %126 = arith.subf %122, %125 : vector<8x8xf32>
    %127 = math.exp %126 : vector<8x8xf32>
    %cst_48 = arith.constant dense<0.000000e+00> : vector<8xf32>
    %128 = vector.multi_reduction <add>, %127, %cst_48 [1] : vector<8x8xf32> to vector<8xf32>
    %129 = vector.shape_cast %128 : vector<8xf32> to vector<8x1xf32>
    %130 = vector.broadcast %129 : vector<8x1xf32> to vector<8x8xf32>
    %131 = arith.divf %127, %130 : vector<8x8xf32>
    %cst_49 = arith.constant dense<0.000000e+00> : vector<8x8xf32>
    %132 = tpu.matmul %131, %119, %cst_49 {dimension_numbers = #tpu.dot_dimension_numbers<[1], [0], [0], [1], [0, 0, 1, 1], [], []>} : vector<8x8xf32>, vector<8x8xf32>, vector<8x8xf32> -> vector<8x8xf32>
    %133 = vector.extract_strided_slice %35 {offsets = [8, 16], sizes = [8, 8], strides = [1, 1]} : vector<48x96xf32> to vector<8x8xf32>
    %134 = vector.extract_strided_slice %35 {offsets = [24, 48], sizes = [8, 8], strides = [1, 1]} : vector<48x96xf32> to vector<8x8xf32>
    %135 = vector.extract_strided_slice %35 {offsets = [40, 80], sizes = [8, 8], strides = [1, 1]} : vector<48x96xf32> to vector<8x8xf32>
    %cst_50 = arith.constant dense<0.000000e+00> : vector<8x8xf32>
    %136 = tpu.matmul %133, %134, %cst_50 {dimension_numbers = #tpu.dot_dimension_numbers<[1], [1], [0], [0], [0, 0, 1, 0], [], []>} : vector<8x8xf32>, vector<8x8xf32>, vector<8x8xf32> -> vector<8x8xf32>
    %cst_51 = arith.constant 0.353553385 : f32
    %137 = vector.broadcast %cst_51 : f32 to vector<8x8xf32>
    %138 = arith.mulf %136, %137 : vector<8x8xf32>
    %cst_52 = arith.constant dense<0xFF800000> : vector<8xf32>
    %139 = vector.multi_reduction <maximumf>, %138, %cst_52 [1] : vector<8x8xf32> to vector<8xf32>
    %140 = vector.shape_cast %139 : vector<8xf32> to vector<8x1xf32>
    %141 = vector.broadcast %140 : vector<8x1xf32> to vector<8x8xf32>
    %142 = arith.subf %138, %141 : vector<8x8xf32>
    %143 = math.exp %142 : vector<8x8xf32>
    %cst_53 = arith.constant dense<0.000000e+00> : vector<8xf32>
    %144 = vector.multi_reduction <add>, %143, %cst_53 [1] : vector<8x8xf32> to vector<8xf32>
    %145 = vector.shape_cast %144 : vector<8xf32> to vector<8x1xf32>
    %146 = vector.broadcast %145 : vector<8x1xf32> to vector<8x8xf32>
    %147 = arith.divf %143, %146 : vector<8x8xf32>
    %cst_54 = arith.constant dense<0.000000e+00> : vector<8x8xf32>
    %148 = tpu.matmul %147, %135, %cst_54 {dimension_numbers = #tpu.dot_dimension_numbers<[1], [0], [0], [1], [0, 0, 1, 1], [], []>} : vector<8x8xf32>, vector<8x8xf32>, vector<8x8xf32> -> vector<8x8xf32>
    %149 = vector.extract_strided_slice %35 {offsets = [8, 24], sizes = [8, 8], strides = [1, 1]} : vector<48x96xf32> to vector<8x8xf32>
    %150 = vector.extract_strided_slice %35 {offsets = [24, 56], sizes = [8, 8], strides = [1, 1]} : vector<48x96xf32> to vector<8x8xf32>
    %151 = vector.extract_strided_slice %35 {offsets = [40, 88], sizes = [8, 8], strides = [1, 1]} : vector<48x96xf32> to vector<8x8xf32>
    %cst_55 = arith.constant dense<0.000000e+00> : vector<8x8xf32>
    %152 = tpu.matmul %149, %150, %cst_55 {dimension_numbers = #tpu.dot_dimension_numbers<[1], [1], [0], [0], [0, 0, 1, 0], [], []>} : vector<8x8xf32>, vector<8x8xf32>, vector<8x8xf32> -> vector<8x8xf32>
    %cst_56 = arith.constant 0.353553385 : f32
    %153 = vector.broadcast %cst_56 : f32 to vector<8x8xf32>
    %154 = arith.mulf %152, %153 : vector<8x8xf32>
    %cst_57 = arith.constant dense<0xFF800000> : vector<8xf32>
    %155 = vector.multi_reduction <maximumf>, %154, %cst_57 [1] : vector<8x8xf32> to vector<8xf32>
    %156 = vector.shape_cast %155 : vector<8xf32> to vector<8x1xf32>
    %157 = vector.broadcast %156 : vector<8x1xf32> to vector<8x8xf32>
    %158 = arith.subf %154, %157 : vector<8x8xf32>
    %159 = math.exp %158 : vector<8x8xf32>
    %cst_58 = arith.constant dense<0.000000e+00> : vector<8xf32>
    %160 = vector.multi_reduction <add>, %159, %cst_58 [1] : vector<8x8xf32> to vector<8xf32>
    %161 = vector.shape_cast %160 : vector<8xf32> to vector<8x1xf32>
    %162 = vector.broadcast %161 : vector<8x1xf32> to vector<8x8xf32>
    %163 = arith.divf %159, %162 : vector<8x8xf32>
    %cst_59 = arith.constant dense<0.000000e+00> : vector<8x8xf32>
    %164 = tpu.matmul %163, %151, %cst_59 {dimension_numbers = #tpu.dot_dimension_numbers<[1], [0], [0], [1], [0, 0, 1, 1], [], []>} : vector<8x8xf32>, vector<8x8xf32>, vector<8x8xf32> -> vector<8x8xf32>
    %165 = tpu.concatenate %116, %132, %148, %164 in 1 : vector<8x8xf32>, vector<8x8xf32>, vector<8x8xf32>, vector<8x8xf32> -> vector<8x32xf32>
    %166 = tpu.concatenate %100, %165 in 0 : vector<8x32xf32>, vector<8x32xf32> -> vector<16x32xf32>
    %cst_60 = arith.constant dense<0.000000e+00> : vector<16x32xf32>
    %167 = tpu.matmul %166, %1, %cst_60 {dimension_numbers = #tpu.dot_dimension_numbers<[1], [0], [0], [1], [0, 0, 1, 1], [], []>} : vector<16x32xf32>, vector<32x32xf32>, vector<16x32xf32> -> vector<16x32xf32>
    %168 = vector.broadcast %5 : vector<1x32xf32> to vector<16x32xf32>
    %169 = arith.addf %167, %168 : vector<16x32xf32>
    %170 = vector.shape_cast %169 : vector<16x32xf32> to vector<2x8x32xf32>
    %c0_61 = arith.constant 0 : index
    %c0_62 = arith.constant 0 : index
    %c0_63 = arith.constant 0 : index
    %171 = vector.load %arg4[%c0_61, %c0_62, %c0_63] : memref<2x8x32xf32, #tpu.memory_space<vmem>>, vector<2x8x32xf32>
    tpu.vector_store %arg4[%c0_61, %c0_62, %c0_63], %170 {strides = array<i32>} : memref<2x8x32xf32, #tpu.memory_space<vmem>>, vector<2x8x32xf32>,
    return
  }
}

</mosaic_0001>

<llo_original>
// kernel: mhca_pallas.1
$region0: #{mhca_pallas.1}
  #allocation0 [shape = 'u32[]', space=smem, size = 0x4, offset = 0x4, fixed_abs, tag = 'smem constant byte address 0x4 - core index']
  #allocation1 [shape = 'u32[144,128]{1,0:T(1,128)}', space=vmem, size = 0x12000, scoped, tag = 'internal scratch']
  %s0 = inlined_call_operand.hbm [shape: f32[2,8,32], index: 0, kind: input, shape index: {}]
  %s1 = inlined_call_operand.hbm [shape: f32[2,8,32], index: 1, kind: input, shape index: {}]
  %s2 = inlined_call_operand.hbm [shape: f32[2,8,32], index: 2, kind: input, shape index: {}]
  %s3 = inlined_call_operand.hbm [shape: f32[40,128], index: 3, kind: input, shape index: {}]
  %s4 = inlined_call_operand.hbm [shape: f32[2,8,32], index: 4, kind: output, shape index: {}]
  %s5 = sld [smem:[#allocation0]]
  $region42: #{mhca_pallas.1} parent=0
    _
  %s7 = ssub.s32 1, %s5
  %s8 = scalar_select 0, %s7, %s5
  $region1: #{mhca_pallas.1} parent=0
    #allocation2 [shape = 'u8[8192]{0}', space=vmem, size = 0x2000, scoped, tag = 'input window, operand 0, single buffered']
    #allocation3 [shape = 's32[1]{0}', space=sflag, size = 0x4, scoped, tag = 'scoped memory for mhca_pallas.1']
    #allocation4 [shape = 's32[1]{0}', space=sflag, size = 0x4, scoped, tag = 'scoped memory for mhca_pallas.1']
    #allocation5 [shape = 'u8[8192]{0}', space=vmem, size = 0x2000, scoped, tag = 'input window, operand 1, single buffered']
    #allocation6 [shape = 's32[1]{0}', space=sflag, size = 0x4, scoped, tag = 'scoped memory for mhca_pallas.1']
    #allocation7 [shape = 'u8[8192]{0}', space=vmem, size = 0x2000, scoped, tag = 'input window, operand 2, single buffered']
    #allocation8 [shape = 'u8[20480]{0}', space=vmem, size = 0x5000, scoped, tag = 'input window, operand 3, single buffered']
    #allocation9 [shape = 's32[1]{0}', space=sflag, size = 0x4, scoped, tag = 'scoped memory for mhca_pallas.1']
    #allocation10 [shape = 'u8[8192]{0}', space=vmem, size = 0x2000, scoped, tag = 'output window, operand 0, single buffered']
    %9 = vsyncpa [#allocation3], 0
    %10 = vsyncpa [#allocation6], 0
    %11 = vsyncpa [#allocation9], 0
    %12 = vsyncpa [#allocation4], 0
    // Predicated region
    $region2: #{mhca_pallas.1} parent=1 // pred_check
      _
    $region3: #{mhca_pallas.1} parent=1 // pred_check_branch
      %14 = sbr.rel (0) target = $region5
    $region4: #{mhca_pallas.1} parent=1 // pred_region
      %s16 = ssub.s32 256, 256
      %17 = vsyncadd [#allocation3], %s16
      %s18 = sshll.u32 [#allocation2], 4
      %s19 = int_to_ptr.vmem [resolvable:$true] %s18
      %24 = dma.hbm_to_vmem [thread:$0]  %s0, 256, %s19, [#allocation3], 128, 128, 8
    $region5: #{mhca_pallas.1} parent=1 // pred_fallthru
      _
    // Predicated region
    $region6: #{mhca_pallas.1} parent=1 // pred_check
      _
    $region7: #{mhca_pallas.1} parent=1 // pred_check_branch
      %26 = sbr.rel (0) target = $region9
    $region8: #{mhca_pallas.1} parent=1 // pred_region
      %s28 = ssub.s32 256, 256
      %29 = vsyncadd [#allocation6], %s28
      %s30 = sshll.u32 [#allocation5], 4
      %s31 = int_to_ptr.vmem [resolvable:$true] %s30
      %36 = dma.hbm_to_vmem [thread:$0]  %s1, 256, %s31, [#allocation6], 128, 128, 8
    $region9: #{mhca_pallas.1} parent=1 // pred_fallthru
      _
    // Predicated region
    $region10: #{mhca_pallas.1} parent=1 // pred_check
      _
    $region11: #{mhca_pallas.1} parent=1 // pred_check_branch
      %38 = sbr.rel (0) target = $region13
    $region12: #{mhca_pallas.1} parent=1 // pred_region
      %s40 = ssub.s32 256, 256
      %41 = vsyncadd [#allocation6], %s40
      %s42 = sshll.u32 [#allocation7], 4
      %s43 = int_to_ptr.vmem [resolvable:$true] %s42
      %48 = dma.hbm_to_vmem [thread:$0]  %s2, 256, %s43, [#allocation6], 128, 128, 8
    $region13: #{mhca_pallas.1} parent=1 // pred_fallthru
      _
    // Predicated region
    $region14: #{mhca_pallas.1} parent=1 // pred_check
      _
    $region15: #{mhca_pallas.1} parent=1 // pred_check_branch
      %50 = sbr.rel (0) target = $region17
    $region16: #{mhca_pallas.1} parent=1 // pred_region
      %s52 = ssub.s32 640, 640
      %53 = vsyncadd [#allocation9], %s52
      %s54 = sshll.u32 [#allocation8], 4
      %s55 = int_to_ptr.vmem [resolvable:$true] %s54
      %60 = dma.hbm_to_vmem [thread:$0]  %s3, 640, %s55, [#allocation9], 128, 128, 8
    $region17: #{mhca_pallas.1} parent=1 // pred_fallthru
      _
    // Predicated region
    $region18: #{mhca_pallas.1} parent=1 // pred_check
      _
    $region19: #{mhca_pallas.1} parent=1 // pred_check_branch
      %62 = sbr.rel (0) target = $region21
    $region20: #{mhca_pallas.1} parent=1 // pred_region
      %63 = dma.done [#allocation3], 256
    $region21: #{mhca_pallas.1} parent=1 // pred_fallthru
      _
    // Predicated region
    $region22: #{mhca_pallas.1} parent=1 // pred_check
      _
    $region23: #{mhca_pallas.1} parent=1 // pred_check_branch
      %65 = sbr.rel (0) target = $region25
    $region24: #{mhca_pallas.1} parent=1 // pred_region
      %66 = dma.done [#allocation6], 256
    $region25: #{mhca_pallas.1} parent=1 // pred_fallthru
      _
    // Predicated region
    $region26: #{mhca_pallas.1} parent=1 // pred_check
      _
    $region27: #{mhca_pallas.1} parent=1 // pred_check_branch
      %68 = sbr.rel (0) target = $region29
    $region28: #{mhca_pallas.1} parent=1 // pred_region
      %69 = dma.done [#allocation6], 256
    $region29: #{mhca_pallas.1} parent=1 // pred_fallthru
      _
    // Predicated region
    $region30: #{mhca_pallas.1} parent=1 // pred_check
      _
    $region31: #{mhca_pallas.1} parent=1 // pred_check_branch
      %71 = sbr.rel (0) target = $region33
    $region32: #{mhca_pallas.1} parent=1 // pred_region
      %72 = dma.done [#allocation9], 640
    $region33: #{mhca_pallas.1} parent=1 // pred_fallthru
      _
    %v73 = vld [vmem:[#allocation8] sm:$0xff]
    %v74 = vld [vmem:[#allocation8 + $0x8] sm:$0xff]
    %v75 = vld [vmem:[#allocation8 + $0x10] sm:$0xff]
    %v76 = vld [vmem:[#allocation8 + $0x18] sm:$0xff]
    %v77 = vld [vmem:[#allocation8 + $0x20] sm:$0x1]
    %v78 = vld [vmem:[#allocation8 + $0x21] sm:$0x1]
    %v79 = vld [vmem:[#allocation8 + $0x22] sm:$0x1]
    %v80 = vld [vmem:[#allocation8 + $0x23] sm:$0x1]
    %v81 = vld [vmem:[#allocation2] sm:$0xff]
    %v82 = vld [vmem:[#allocation2 + $0x8] sm:$0xff]
    %v83 = vld [vmem:[#allocation5] sm:$0xff]
    %v84 = vld [vmem:[#allocation5 + $0x8] sm:$0xff]
    %v85 = vld [vmem:[#allocation7] sm:$0xff]
    %v86 = vld [vmem:[#allocation7 + $0x8] sm:$0xff]
    %vm87 = vcmask 261120
    %v88 = vsel %vm87, %v81, 0.0
    %89 = vadd.xlane.f32.xlu0 %v88
    %v90 = vpop.xlane.xlu0 %89
    %v91 = vsel %vm87, %v82, 0.0
    %92 = vadd.xlane.f32.xlu0 %v91
    %v93 = vpop.xlane.xlu0 %92
    %v94 = vrcp.pop 32.0
    %v95 = vmul.f32 %v90, %v94
    %v96 = vmul.f32 %v93, %v94
    %v97 = vsub.f32 %v81, %v95
    %v98 = vsub.f32 %v82, %v96
    %v99 = vmul.f32 %v97, %v97
    %v100 = vmul.f32 %v98, %v98
    %v101 = vsel %vm87, %v99, 0.0
    %102 = vadd.xlane.f32.xlu0 %v101
    %v103 = vpop.xlane.xlu0 %102
    %v104 = vsel %vm87, %v100, 0.0
    %105 = vadd.xlane.f32.xlu0 %v104
    %v106 = vpop.xlane.xlu0 %105
    %v107 = vmul.f32 %v103, %v94
    %v108 = vmul.f32 %v106, %v94
    %v109 = vadd.f32 %v107, 1e-05
    %v110 = vadd.f32 %v108, 1e-05
    %v111 = vrsqrt.pop %v109
    %v112 = vrsqrt.pop %v110
    %v113 = vmul.f32 %v97, %v111
    %v114 = vmul.f32 %v98, %v112
    %v115 = vlaneseq
    %v116 = vshrl.u32 %v115, 7
    %v117 = vsub.s32 0, %v116
    %v118 = vrot.slane %v78, %v117
    %v119 = vmul.f32 %v113, %v118
    %v120 = vmul.f32 %v114, %v118
    %v121 = vlaneseq
    %v122 = vshrl.u32 %v121, 7
    %v123 = vsub.s32 0, %v122
    %v124 = vrot.slane %v79, %v123
    %v125 = vadd.f32 %v119, %v124
    %v126 = vadd.f32 %v120, %v124
    %v127 = vlaneseq
    %v128 = vshrl.u32 %v127, 7
    %v129 = vsub.s32 0, %v128
    %v130 = vrot.slane %v77, %v129
    %v132 = vsel %vm87, %v125, 0
    %v135 = vsel %vm87, %v126, 0
    %v138 = vsel %vm87, %v83, 0
    %v141 = vsel %vm87, %v84, 0
    %v144 = vsel %vm87, %v85, 0
    %v147 = vsel %vm87, %v86, 0
    %149 = vmatprep.subr.mxu0 0.0
    %150 = vmatpush1.msra.mxu0 %v73
    %151 = vmatprep.subr.mxu0 0.0
    %152 = vmatpush1.msra.mxu0 %v74
    %153 = vmatprep.subr.mxu0 0.0
    %154 = vmatpush1.msra.mxu0 %v75
    %155 = vmatprep.subr.mxu0 0.0
    %156 = vmatpush1.msra.mxu0 %v76
    %157 = vmatprep.subr.mxu0 0.0
    %158 = vmatpush1.msra.mxu0 0.0
    %159 = vmatprep.subr.mxu0 0.0
    %160 = vmatpush1.msra.mxu0 0.0
    %161 = vmatprep.subr.mxu0 0.0
    %162 = vmatpush1.msra.mxu0 0.0
    %163 = vmatprep.subr.mxu0 0.0
    %164 = vmatpush1.msra.mxu0 0.0
    %165 = vmatprep.subr.mxu0 0.0
    %166 = vmatpush1.msra.mxu0 0.0
    %167 = vmatprep.subr.mxu0 0.0
    %168 = vmatpush1.msra.mxu0 0.0
    %169 = vmatprep.subr.mxu0 0.0
    %170 = vmatpush1.msra.mxu0 0.0
    %171 = vmatprep.subr.mxu0 0.0
    %172 = vmatpush1.msra.mxu0 0.0
    %173 = vmatprep.subr.mxu0 0.0
    %174 = vmatpush1.msra.mxu0 0.0
    %175 = vmatprep.subr.mxu0 0.0
    %176 = vmatpush1.msra.mxu0 0.0
    %177 = vmatprep.subr.mxu0 0.0
    %178 = vmatpush1.msra.mxu0 0.0
    %179 = vmatprep.subr.mxu0 0.0
    %180 = vmatpush1.msra.mxu0 0.0
    %181 = vmatprep.subr.mxu0 0.0
    %182 = vmatpush1.msra.mxu0 0.0
    %183 = vmatprep.subr.mxu0 0.0
    %184 = vmatpush1.msra.mxu0 0.0
    %185 = vmatprep.subr.mxu0 0.0
    %186 = vmatpush1.msra.mxu0 0.0
    %187 = vmatprep.subr.mxu0 0.0
    %188 = vmatpush1.msra.mxu0 0.0
    %189 = vmatprep.subr.mxu0 0.0
    %190 = vmatpush1.msra.mxu0 0.0
    %191 = vmatprep.subr.mxu0 0.0
    %192 = vmatpush1.msra.mxu0 0.0
    %193 = vmatprep.subr.mxu0 0.0
    %194 = vmatpush1.msra.mxu0 0.0
    %195 = vmatprep.subr.mxu0 0.0
    %196 = vmatpush1.msra.mxu0 0.0
    %197 = vmatprep.subr.mxu0 0.0
    %198 = vmatpush1.msra.mxu0 0.0
    %199 = vmatprep.subr.mxu0 0.0
    %200 = vmatpush1.msra.mxu0 0.0
    %201 = vmatprep.subr.mxu0 0.0
    %202 = vmatpush1.msra.mxu0 0.0
    %203 = vmatprep.subr.mxu0 0.0
    %204 = vmatpush1.msra.mxu0 0.0
    %205 = vmatprep.subr.mxu0 0.0
    %206 = vmatpush1.msra.mxu0 0.0
    %207 = vmatprep.subr.mxu0 0.0
    %208 = vmatpush1.msra.mxu0 0.0
    %209 = vmatprep.subr.mxu0 0.0
    %210 = vmatpush1.msra.mxu0 0.0
    %211 = vmatprep.subr.mxu0 0.0
    %212 = vmatpush1.msra.mxu0 0.0
    %213 = vmatprep.mubr.f32.mxu0 0.0
    %214 = vmatmul.mubr.f32.gmra.mrb[0].mxu0 %v132
    %v215 = vpop.f32.mrb[0].mxu0
    %v216 = vadd.f32 %v130, %v215
    %v217 = vpop.f32.mrb[0].mxu0
    %218 = vmatprep.mubr.f32.mxu0 0.0
    %219 = vmatmul.mubr.f32.gmra.mrb[0].mxu0 %v135
    %v220 = vpop.f32.mrb[0].mxu0
    %v221 = vadd.f32 %v130, %v220
    %v222 = vpop.f32.mrb[0].mxu0
    %223 = vmatprep.mubr.f32.mxu0 0.0
    %224 = vmatmul.mubr.f32.gmra.mrb[0].mxu0 %v138
    %v225 = vpop.f32.mrb[0].mxu0
    %v226 = vadd.f32 %v130, %v225
    %v227 = vpop.f32.mrb[0].mxu0
    %228 = vmatprep.mubr.f32.mxu0 0.0
    %229 = vmatmul.mubr.f32.gmra.mrb[0].mxu0 %v141
    %v230 = vpop.f32.mrb[0].mxu0
    %v231 = vadd.f32 %v130, %v230
    %v232 = vpop.f32.mrb[0].mxu0
    %233 = vmatprep.mubr.f32.mxu0 0.0
    %234 = vmatmul.mubr.f32.gmra.mrb[0].mxu0 %v144
    %v235 = vpop.f32.mrb[0].mxu0
    %v236 = vadd.f32 %v130, %v235
    %v237 = vpop.f32.mrb[0].mxu0
    %238 = vmatprep.mubr.f32.mxu0 0.0
    %239 = vmatmul.mubr.f32.gmra.mrb[0].mxu0 %v147
    %v240 = vpop.f32.mrb[0].mxu0
    %v241 = vadd.f32 %v130, %v240
    %v242 = vpop.f32.mrb[0].mxu0
    %243 = vdwg.mxu0
    %245 = vrot.lane.b32.xlu0 %v226, 96
    %v246 = vpop.permute.xlu0 %245
    %vm247 = vcmask 64512
    %v249 = vsel %vm247, %v216, 0
    %v251 = vsel %vm247, %v246, 0
    %253 = vmatprep.subr.mxu0 0.0
    %254 = vmatpush1.xpose.msra.mxu0 %v251
    %255 = vmatprep.subr.mxu0 0.0
    %256 = vmatpush1.xpose.msra.mxu0 0.0
    %257 = vmatprep.subr.mxu0 0.0
    %258 = vmatpush1.xpose.msra.mxu0 0.0
    %259 = vmatprep.subr.mxu0 0.0
    %260 = vmatpush1.xpose.msra.mxu0 0.0
    %261 = vmatprep.subr.mxu0 0.0
    %262 = vmatpush1.xpose.msra.mxu0 0.0
    %263 = vmatprep.subr.mxu0 0.0
    %264 = vmatpush1.xpose.msra.mxu0 0.0
    %265 = vmatprep.subr.mxu0 0.0
    %266 = vmatpush1.xpose.msra.mxu0 0.0
    %267 = vmatprep.subr.mxu0 0.0
    %268 = vmatpush1.xpose.msra.mxu0 0.0
    %269 = vmatprep.subr.mxu0 0.0
    %270 = vmatpush1.xpose.msra.mxu0 0.0
    %271 = vmatprep.subr.mxu0 0.0
    %272 = vmatpush1.xpose.msra.mxu0 0.0
    %273 = vmatprep.subr.mxu0 0.0
    %274 = vmatpush1.xpose.msra.mxu0 0.0
    %275 = vmatprep.subr.mxu0 0.0
    %276 = vmatpush1.xpose.msra.mxu0 0.0
    %277 = vmatprep.subr.mxu0 0.0
    %278 = vmatpush1.xpose.msra.mxu0 0.0
    %279 = vmatprep.subr.mxu0 0.0
    %280 = vmatpush1.xpose.msra.mxu0 0.0
    %281 = vmatprep.subr.mxu0 0.0
    %282 = vmatpush1.xpose.msra.mxu0 0.0
    %283 = vmatprep.subr.mxu0 0.0
    %284 = vmatpush1.xpose.msra.mxu0 0.0
    %285 = vmatprep.subr.mxu0 0.0
    %286 = vmatpush1.xpose.msra.mxu0 0.0
    %287 = vmatprep.subr.mxu0 0.0
    %288 = vmatpush1.xpose.msra.mxu0 0.0
    %289 = vmatprep.subr.mxu0 0.0
    %290 = vmatpush1.xpose.msra.mxu0 0.0
    %291 = vmatprep.subr.mxu0 0.0
    %292 = vmatpush1.xpose.msra.mxu0 0.0
    %293 = vmatprep.subr.mxu0 0.0
    %294 = vmatpush1.xpose.msra.mxu0 0.0
    %295 = vmatprep.subr.mxu0 0.0
    %296 = vmatpush1.xpose.msra.mxu0 0.0
    %297 = vmatprep.subr.mxu0 0.0
    %298 = vmatpush1.xpose.msra.mxu0 0.0
    %299 = vmatprep.subr.mxu0 0.0
    %300 = vmatpush1.xpose.msra.mxu0 0.0
    %301 = vmatprep.subr.mxu0 0.0
    %302 = vmatpush1.xpose.msra.mxu0 0.0
    %303 = vmatprep.subr.mxu0 0.0
    %304 = vmatpush1.xpose.msra.mxu0 0.0
    %305 = vmatprep.subr.mxu0 0.0
    %306 = vmatpush1.xpose.msra.mxu0 0.0
    %307 = vmatprep.subr.mxu0 0.0
    %308 = vmatpush1.xpose.msra.mxu0 0.0
    %309 = vmatprep.subr.mxu0 0.0
    %310 = vmatpush1.xpose.msra.mxu0 0.0
    %311 = vmatprep.subr.mxu0 0.0
    %312 = vmatpush1.xpose.msra.mxu0 0.0
    %313 = vmatprep.subr.mxu0 0.0
    %314 = vmatpush1.xpose.msra.mxu0 0.0
    %315 = vmatprep.subr.mxu0 0.0
    %316 = vmatpush1.xpose.msra.mxu0 0.0
    %317 = vmatprep.mubr.f32.mxu0 0.0
    %318 = vmatmul.mubr.f32.gmra.mrb[0].mxu0 %v249
    %v319 = vpop.f32.mrb[0].mxu0
    %v320 = vadd.f32 0.0, %v319
    %v321 = vpop.f32.mrb[0].mxu0
    %322 = vdwg.mxu0
    %v323 = vmul.f32 %v320, 0.35355338
    %v324 = vsel %vm247, %v323, -inf
    %325 = vmax.xlane.f32.xlu0 %v324
    %v326 = vpop.xlane.xlu0 %325
    %v327 = vsub.f32 %v323, %v326
    %v328 = vmul.f32 %v327, 1.442695
    %v329 = vpow.pop %v328
    %v330 = vsel %vm247, %v329, 0.0
    %331 = vadd.xlane.f32.xlu0 %v330
    %v332 = vpop.xlane.xlu0 %331
    %v333 = vrcp.pop %v332
    %v334 = vmul.f32 %v329, %v333
    %336 = vrot.lane.b32.xlu0 %v236, 64
    %v337 = vpop.permute.xlu0 %336
    %v340 = vsel %vm247, %v334, 0
    %342 = vmatprep.subr.mxu0 0.0
    %343 = vmatpush1.msra.mxu0 %v337
    %344 = vmatprep.subr.mxu0 0.0
    %345 = vmatpush1.msra.mxu0 0.0
    %346 = vmatprep.subr.mxu0 0.0
    %347 = vmatpush1.msra.mxu0 0.0
    %348 = vmatprep.subr.mxu0 0.0
    %349 = vmatpush1.msra.mxu0 0.0
    %350 = vmatprep.subr.mxu0 0.0
    %351 = vmatpush1.msra.mxu0 0.0
    %352 = vmatprep.subr.mxu0 0.0
    %353 = vmatpush1.msra.mxu0 0.0
    %354 = vmatprep.subr.mxu0 0.0
    %355 = vmatpush1.msra.mxu0 0.0
    %356 = vmatprep.subr.mxu0 0.0
    %357 = vmatpush1.msra.mxu0 0.0
    %358 = vmatprep.subr.mxu0 0.0
    %359 = vmatpush1.msra.mxu0 0.0
    %360 = vmatprep.subr.mxu0 0.0
    %361 = vmatpush1.msra.mxu0 0.0
    %362 = vmatprep.subr.mxu0 0.0
    %363 = vmatpush1.msra.mxu0 0.0
    %364 = vmatprep.subr.mxu0 0.0
    %365 = vmatpush1.msra.mxu0 0.0
    %366 = vmatprep.subr.mxu0 0.0
    %367 = vmatpush1.msra.mxu0 0.0
    %368 = vmatprep.subr.mxu0 0.0
    %369 = vmatpush1.msra.mxu0 0.0
    %370 = vmatprep.subr.mxu0 0.0
    %371 = vmatpush1.msra.mxu0 0.0
    %372 = vmatprep.subr.mxu0 0.0
    %373 = vmatpush1.msra.mxu0 0.0
    %374 = vmatprep.subr.mxu0 0.0
    %375 = vmatpush1.msra.mxu0 0.0
    %376 = vmatprep.subr.mxu0 0.0
    %377 = vmatpush1.msra.mxu0 0.0
    %378 = vmatprep.subr.mxu0 0.0
    %379 = vmatpush1.msra.mxu0 0.0
    %380 = vmatprep.subr.mxu0 0.0
    %381 = vmatpush1.msra.mxu0 0.0
    %382 = vmatprep.subr.mxu0 0.0
    %383 = vmatpush1.msra.mxu0 0.0
    %384 = vmatprep.subr.mxu0 0.0
    %385 = vmatpush1.msra.mxu0 0.0
    %386 = vmatprep.subr.mxu0 0.0
    %387 = vmatpush1.msra.mxu0 0.0
    %388 = vmatprep.subr.mxu0 0.0
    %389 = vmatpush1.msra.mxu0 0.0
    %390 = vmatprep.subr.mxu0 0.0
    %391 = vmatpush1.msra.mxu0 0.0
    %392 = vmatprep.subr.mxu0 0.0
    %393 = vmatpush1.msra.mxu0 0.0
    %394 = vmatprep.subr.mxu0 0.0
    %395 = vmatpush1.msra.mxu0 0.0
    %396 = vmatprep.subr.mxu0 0.0
    %397 = vmatpush1.msra.mxu0 0.0
    %398 = vmatprep.subr.mxu0 0.0
    %399 = vmatpush1.msra.mxu0 0.0
    %400 = vmatprep.subr.mxu0 0.0
    %401 = vmatpush1.msra.mxu0 0.0
    %402 = vmatprep.subr.mxu0 0.0
    %403 = vmatpush1.msra.mxu0 0.0
    %404 = vmatprep.subr.mxu0 0.0
    %405 = vmatpush1.msra.mxu0 0.0
    %406 = vmatprep.mubr.f32.mxu0 0.0
    %407 = vmatmul.mubr.f32.gmra.mrb[0].mxu0 %v340
    %v408 = vpop.f32.mrb[0].mxu0
    %v409 = vadd.f32 0.0, %v408
    %v410 = vpop.f32.mrb[0].mxu0
    %411 = vdwg.mxu0
    %412 = vrot.lane.b32.xlu0 %v216, 120
    %v413 = vpop.permute.xlu0 %412
    %414 = vrot.lane.b32.xlu0 %v226, 88
    %v415 = vpop.permute.xlu0 %414
    %v416 = vsel %vm247, %v413, 0
    %v418 = vsel %vm247, %v415, 0
    %420 = vmatprep.subr.mxu0 0.0
    %421 = vmatpush1.xpose.msra.mxu0 %v418
    %422 = vmatprep.subr.mxu0 0.0
    %423 = vmatpush1.xpose.msra.mxu0 0.0
    %424 = vmatprep.subr.mxu0 0.0
    %425 = vmatpush1.xpose.msra.mxu0 0.0
    %426 = vmatprep.subr.mxu0 0.0
    %427 = vmatpush1.xpose.msra.mxu0 0.0
    %428 = vmatprep.subr.mxu0 0.0
    %429 = vmatpush1.xpose.msra.mxu0 0.0
    %430 = vmatprep.subr.mxu0 0.0
    %431 = vmatpush1.xpose.msra.mxu0 0.0
    %432 = vmatprep.subr.mxu0 0.0
    %433 = vmatpush1.xpose.msra.mxu0 0.0
    %434 = vmatprep.subr.mxu0 0.0
    %435 = vmatpush1.xpose.msra.mxu0 0.0
    %436 = vmatprep.subr.mxu0 0.0
    %437 = vmatpush1.xpose.msra.mxu0 0.0
    %438 = vmatprep.subr.mxu0 0.0
    %439 = vmatpush1.xpose.msra.mxu0 0.0
    %440 = vmatprep.subr.mxu0 0.0
    %441 = vmatpush1.xpose.msra.mxu0 0.0
    %442 = vmatprep.subr.mxu0 0.0
    %443 = vmatpush1.xpose.msra.mxu0 0.0
    %444 = vmatprep.subr.mxu0 0.0
    %445 = vmatpush1.xpose.msra.mxu0 0.0
    %446 = vmatprep.subr.mxu0 0.0
    %447 = vmatpush1.xpose.msra.mxu0 0.0
    %448 = vmatprep.subr.mxu0 0.0
    %449 = vmatpush1.xpose.msra.mxu0 0.0
    %450 = vmatprep.subr.mxu0 0.0
    %451 = vmatpush1.xpose.msra.mxu0 0.0
    %452 = vmatprep.subr.mxu0 0.0
    %453 = vmatpush1.xpose.msra.mxu0 0.0
    %454 = vmatprep.subr.mxu0 0.0
    %455 = vmatpush1.xpose.msra.mxu0 0.0
    %456 = vmatprep.subr.mxu0 0.0
    %457 = vmatpush1.xpose.msra.mxu0 0.0
    %458 = vmatprep.subr.mxu0 0.0
    %459 = vmatpush1.xpose.msra.mxu0 0.0
    %460 = vmatprep.subr.mxu0 0.0
    %461 = vmatpush1.xpose.msra.mxu0 0.0
    %462 = vmatprep.subr.mxu0 0.0
    %463 = vmatpush1.xpose.msra.mxu0 0.0
    %464 = vmatprep.subr.mxu0 0.0
    %465 = vmatpush1.xpose.msra.mxu0 0.0
    %466 = vmatprep.subr.mxu0 0.0
    %467 = vmatpush1.xpose.msra.mxu0 0.0
    %468 = vmatprep.subr.mxu0 0.0
    %469 = vmatpush1.xpose.msra.mxu0 0.0
    %470 = vmatprep.subr.mxu0 0.0
    %471 = vmatpush1.xpose.msra.mxu0 0.0
    %472 = vmatprep.subr.mxu0 0.0
    %473 = vmatpush1.xpose.msra.mxu0 0.0
    %474 = vmatprep.subr.mxu0 0.0
    %475 = vmatpush1.xpose.msra.mxu0 0.0
    %476 = vmatprep.subr.mxu0 0.0
    %477 = vmatpush1.xpose.msra.mxu0 0.0
    %478 = vmatprep.subr.mxu0 0.0
    %479 = vmatpush1.xpose.msra.mxu0 0.0
    %480 = vmatprep.subr.mxu0 0.0
    %481 = vmatpush1.xpose.msra.mxu0 0.0
    %482 = vmatprep.subr.mxu0 0.0
    %483 = vmatpush1.xpose.msra.mxu0 0.0
    %484 = vmatprep.mubr.f32.mxu0 0.0
    %485 = vmatmul.mubr.f32.gmra.mrb[0].mxu0 %v416
    %v486 = vpop.f32.mrb[0].mxu0
    %v487 = vadd.f32 0.0, %v486
    %v488 = vpop.f32.mrb[0].mxu0
    %489 = vdwg.mxu0
    %v490 = vmul.f32 %v487, 0.35355338
    %v491 = vsel %vm247, %v490, -inf
    %492 = vmax.xlane.f32.xlu0 %v491
    %v493 = vpop.xlane.xlu0 %492
    %v494 = vsub.f32 %v490, %v493
    %v495 = vmul.f32 %v494, 1.442695
    %v496 = vpow.pop %v495
    %v497 = vsel %vm247, %v496, 0.0
    %498 = vadd.xlane.f32.xlu0 %v497
    %v499 = vpop.xlane.xlu0 %498
    %v500 = vrcp.pop %v499
    %v501 = vmul.f32 %v496, %v500
    %502 = vrot.lane.b32.xlu0 %v236, 56
    %v503 = vpop.permute.xlu0 %502
    %v506 = vsel %vm247, %v501, 0
    %508 = vmatprep.subr.mxu0 0.0
    %509 = vmatpush1.msra.mxu0 %v503
    %510 = vmatprep.subr.mxu0 0.0
    %511 = vmatpush1.msra.mxu0 0.0
    %512 = vmatprep.subr.mxu0 0.0
    %513 = vmatpush1.msra.mxu0 0.0
    %514 = vmatprep.subr.mxu0 0.0
    %515 = vmatpush1.msra.mxu0 0.0
    %516 = vmatprep.subr.mxu0 0.0
    %517 = vmatpush1.msra.mxu0 0.0
    %518 = vmatprep.subr.mxu0 0.0
    %519 = vmatpush1.msra.mxu0 0.0
    %520 = vmatprep.subr.mxu0 0.0
    %521 = vmatpush1.msra.mxu0 0.0
    %522 = vmatprep.subr.mxu0 0.0
    %523 = vmatpush1.msra.mxu0 0.0
    %524 = vmatprep.subr.mxu0 0.0
    %525 = vmatpush1.msra.mxu0 0.0
    %526 = vmatprep.subr.mxu0 0.0
    %527 = vmatpush1.msra.mxu0 0.0
    %528 = vmatprep.subr.mxu0 0.0
    %529 = vmatpush1.msra.mxu0 0.0
    %530 = vmatprep.subr.mxu0 0.0
    %531 = vmatpush1.msra.mxu0 0.0
    %532 = vmatprep.subr.mxu0 0.0
    %533 = vmatpush1.msra.mxu0 0.0
    %534 = vmatprep.subr.mxu0 0.0
    %535 = vmatpush1.msra.mxu0 0.0
    %536 = vmatprep.subr.mxu0 0.0
    %537 = vmatpush1.msra.mxu0 0.0
    %538 = vmatprep.subr.mxu0 0.0
    %539 = vmatpush1.msra.mxu0 0.0
    %540 = vmatprep.subr.mxu0 0.0
    %541 = vmatpush1.msra.mxu0 0.0
    %542 = vmatprep.subr.mxu0 0.0
    %543 = vmatpush1.msra.mxu0 0.0
    %544 = vmatprep.subr.mxu0 0.0
    %545 = vmatpush1.msra.mxu0 0.0
    %546 = vmatprep.subr.mxu0 0.0
    %547 = vmatpush1.msra.mxu0 0.0
    %548 = vmatprep.subr.mxu0 0.0
    %549 = vmatpush1.msra.mxu0 0.0
    %550 = vmatprep.subr.mxu0 0.0
    %551 = vmatpush1.msra.mxu0 0.0
    %552 = vmatprep.subr.mxu0 0.0
    %553 = vmatpush1.msra.mxu0 0.0
    %554 = vmatprep.subr.mxu0 0.0
    %555 = vmatpush1.msra.mxu0 0.0
    %556 = vmatprep.subr.mxu0 0.0
    %557 = vmatpush1.msra.mxu0 0.0
    %558 = vmatprep.subr.mxu0 0.0
    %559 = vmatpush1.msra.mxu0 0.0
    %560 = vmatprep.subr.mxu0 0.0
    %561 = vmatpush1.msra.mxu0 0.0
    %562 = vmatprep.subr.mxu0 0.0
    %563 = vmatpush1.msra.mxu0 0.0
    %564 = vmatprep.subr.mxu0 0.0
    %565 = vmatpush1.msra.mxu0 0.0
    %566 = vmatprep.subr.mxu0 0.0
    %567 = vmatpush1.msra.mxu0 0.0
    %568 = vmatprep.subr.mxu0 0.0
    %569 = vmatpush1.msra.mxu0 0.0
    %570 = vmatprep.subr.mxu0 0.0
    %571 = vmatpush1.msra.mxu0 0.0
    %572 = vmatprep.mubr.f32.mxu0 0.0
    %573 = vmatmul.mubr.f32.gmra.mrb[0].mxu0 %v506
    %v574 = vpop.f32.mrb[0].mxu0
    %v575 = vadd.f32 0.0, %v574
    %v576 = vpop.f32.mrb[0].mxu0
    %577 = vdwg.mxu0
    %578 = vrot.lane.b32.xlu0 %v216, 112
    %v579 = vpop.permute.xlu0 %578
    %580 = vrot.lane.b32.xlu0 %v226, 80
    %v581 = vpop.permute.xlu0 %580
    %v582 = vsel %vm247, %v579, 0
    %v584 = vsel %vm247, %v581, 0
    %586 = vmatprep.subr.mxu0 0.0
    %587 = vmatpush1.xpose.msra.mxu0 %v584
    %588 = vmatprep.subr.mxu0 0.0
    %589 = vmatpush1.xpose.msra.mxu0 0.0
    %590 = vmatprep.subr.mxu0 0.0
    %591 = vmatpush1.xpose.msra.mxu0 0.0
    %592 = vmatprep.subr.mxu0 0.0
    %593 = vmatpush1.xpose.msra.mxu0 0.0
    %594 = vmatprep.subr.mxu0 0.0
    %595 = vmatpush1.xpose.msra.mxu0 0.0
    %596 = vmatprep.subr.mxu0 0.0
    %597 = vmatpush1.xpose.msra.mxu0 0.0
    %598 = vmatprep.subr.mxu0 0.0
    %599 = vmatpush1.xpose.msra.mxu0 0.0
    %600 = vmatprep.subr.mxu0 0.0
    %601 = vmatpush1.xpose.msra.mxu0 0.0
    %602 = vmatprep.subr.mxu0 0.0
    %603 = vmatpush1.xpose.msra.mxu0 0.0
    %604 = vmatprep.subr.mxu0 0.0
    %605 = vmatpush1.xpose.msra.mxu0 0.0
    %606 = vmatprep.subr.mxu0 0.0
    %607 = vmatpush1.xpose.msra.mxu0 0.0
    %608 = vmatprep.subr.mxu0 0.0
    %609 = vmatpush1.xpose.msra.mxu0 0.0
    %610 = vmatprep.subr.mxu0 0.0
    %611 = vmatpush1.xpose.msra.mxu0 0.0
    %612 = vmatprep.subr.mxu0 0.0
    %613 = vmatpush1.xpose.msra.mxu0 0.0
    %614 = vmatprep.subr.mxu0 0.0
    %615 = vmatpush1.xpose.msra.mxu0 0.0
    %616 = vmatprep.subr.mxu0 0.0
    %617 = vmatpush1.xpose.msra.mxu0 0.0
    %618 = vmatprep.subr.mxu0 0.0
    %619 = vmatpush1.xpose.msra.mxu0 0.0
    %620 = vmatprep.subr.mxu0 0.0
    %621 = vmatpush1.xpose.msra.mxu0 0.0
    %622 = vmatprep.subr.mxu0 0.0
    %623 = vmatpush1.xpose.msra.mxu0 0.0
    %624 = vmatprep.subr.mxu0 0.0
    %625 = vmatpush1.xpose.msra.mxu0 0.0
    %626 = vmatprep.subr.mxu0 0.0
    %627 = vmatpush1.xpose.msra.mxu0 0.0
    %628 = vmatprep.subr.mxu0 0.0
    %629 = vmatpush1.xpose.msra.mxu0 0.0
    %630 = vmatprep.subr.mxu0 0.0
    %631 = vmatpush1.xpose.msra.mxu0 0.0
    %632 = vmatprep.subr.mxu0 0.0
    %633 = vmatpush1.xpose.msra.mxu0 0.0
    %634 = vmatprep.subr.mxu0 0.0
    %635 = vmatpush1.xpose.msra.mxu0 0.0
    %636 = vmatprep.subr.mxu0 0.0
    %637 = vmatpush1.xpose.msra.mxu0 0.0
    %638 = vmatprep.subr.mxu0 0.0
    %639 = vmatpush1.xpose.msra.mxu0 0.0
    %640 = vmatprep.subr.mxu0 0.0
    %641 = vmatpush1.xpose.msra.mxu0 0.0
    %642 = vmatprep.subr.mxu0 0.0
    %643 = vmatpush1.xpose.msra.mxu0 0.0
    %644 = vmatprep.subr.mxu0 0.0
    %645 = vmatpush1.xpose.msra.mxu0 0.0
    %646 = vmatprep.subr.mxu0 0.0
    %647 = vmatpush1.xpose.msra.mxu0 0.0
    %648 = vmatprep.subr.mxu0 0.0
    %649 = vmatpush1.xpose.msra.mxu0 0.0
    %650 = vmatprep.mubr.f32.mxu0 0.0
    %651 = vmatmul.mubr.f32.gmra.mrb[0].mxu0 %v582
    %v652 = vpop.f32.mrb[0].mxu0
    %v653 = vadd.f32 0.0, %v652
    %v654 = vpop.f32.mrb[0].mxu0
    %655 = vdwg.mxu0
    %v656 = vmul.f32 %v653, 0.35355338
    %v657 = vsel %vm247, %v656, -inf
    %658 = vmax.xlane.f32.xlu0 %v657
    %v659 = vpop.xlane.xlu0 %658
    %v660 = vsub.f32 %v656, %v659
    %v661 = vmul.f32 %v660, 1.442695
    %v662 = vpow.pop %v661
    %v663 = vsel %vm247, %v662, 0.0
    %664 = vadd.xlane.f32.xlu0 %v663
    %v665 = vpop.xlane.xlu0 %664
    %v666 = vrcp.pop %v665
    %v667 = vmul.f32 %v662, %v666
    %668 = vrot.lane.b32.xlu0 %v236, 48
    %v669 = vpop.permute.xlu0 %668
    %v672 = vsel %vm247, %v667, 0
    %674 = vmatprep.subr.mxu0 0.0
    %675 = vmatpush1.msra.mxu0 %v669
    %676 = vmatprep.subr.mxu0 0.0
    %677 = vmatpush1.msra.mxu0 0.0
    %678 = vmatprep.subr.mxu0 0.0
    %679 = vmatpush1.msra.mxu0 0.0
    %680 = vmatprep.subr.mxu0 0.0
    %681 = vmatpush1.msra.mxu0 0.0
    %682 = vmatprep.subr.mxu0 0.0
    %683 = vmatpush1.msra.mxu0 0.0
    %684 = vmatprep.subr.mxu0 0.0
    %685 = vmatpush1.msra.mxu0 0.0
    %686 = vmatprep.subr.mxu0 0.0
    %687 = vmatpush1.msra.mxu0 0.0
    %688 = vmatprep.subr.mxu0 0.0
    %689 = vmatpush1.msra.mxu0 0.0
    %690 = vmatprep.subr.mxu0 0.0
    %691 = vmatpush1.msra.mxu0 0.0
    %692 = vmatprep.subr.mxu0 0.0
    %693 = vmatpush1.msra.mxu0 0.0
    %694 = vmatprep.subr.mxu0 0.0
    %695 = vmatpush1.msra.mxu0 0.0
    %696 = vmatprep.subr.mxu0 0.0
    %697 = vmatpush1.msra.mxu0 0.0
    %698 = vmatprep.subr.mxu0 0.0
    %699 = vmatpush1.msra.mxu0 0.0
    %700 = vmatprep.subr.mxu0 0.0
    %701 = vmatpush1.msra.mxu0 0.0
    %702 = vmatprep.subr.mxu0 0.0
    %703 = vmatpush1.msra.mxu0 0.0
    %704 = vmatprep.subr.mxu0 0.0
    %705 = vmatpush1.msra.mxu0 0.0
    %706 = vmatprep.subr.mxu0 0.0
    %707 = vmatpush1.msra.mxu0 0.0
    %708 = vmatprep.subr.mxu0 0.0
    %709 = vmatpush1.msra.mxu0 0.0
    %710 = vmatprep.subr.mxu0 0.0
    %711 = vmatpush1.msra.mxu0 0.0
    %712 = vmatprep.subr.mxu0 0.0
    %713 = vmatpush1.msra.mxu0 0.0
    %714 = vmatprep.subr.mxu0 0.0
    %715 = vmatpush1.msra.mxu0 0.0
    %716 = vmatprep.subr.mxu0 0.0
    %717 = vmatpush1.msra.mxu0 0.0
    %718 = vmatprep.subr.mxu0 0.0
    %719 = vmatpush1.msra.mxu0 0.0
    %720 = vmatprep.subr.mxu0 0.0
    %721 = vmatpush1.msra.mxu0 0.0
    %722 = vmatprep.subr.mxu0 0.0
    %723 = vmatpush1.msra.mxu0 0.0
    %724 = vmatprep.subr.mxu0 0.0
    %725 = vmatpush1.msra.mxu0 0.0
    %726 = vmatprep.subr.mxu0 0.0
    %727 = vmatpush1.msra.mxu0 0.0
    %728 = vmatprep.subr.mxu0 0.0
    %729 = vmatpush1.msra.mxu0 0.0
    %730 = vmatprep.subr.mxu0 0.0
    %731 = vmatpush1.msra.mxu0 0.0
    %732 = vmatprep.subr.mxu0 0.0
    %733 = vmatpush1.msra.mxu0 0.0
    %734 = vmatprep.subr.mxu0 0.0
    %735 = vmatpush1.msra.mxu0 0.0
    %736 = vmatprep.subr.mxu0 0.0
    %737 = vmatpush1.msra.mxu0 0.0
    %738 = vmatprep.mubr.f32.mxu0 0.0
    %739 = vmatmul.mubr.f32.gmra.mrb[0].mxu0 %v672
    %v740 = vpop.f32.mrb[0].mxu0
    %v741 = vadd.f32 0.0, %v740
    %v742 = vpop.f32.mrb[0].mxu0
    %743 = vdwg.mxu0
    %744 = vrot.lane.b32.xlu0 %v216, 104
    %v745 = vpop.permute.xlu0 %744
    %746 = vrot.lane.b32.xlu0 %v226, 72
    %v747 = vpop.permute.xlu0 %746
    %v748 = vsel %vm247, %v745, 0
    %v750 = vsel %vm247, %v747, 0
    %752 = vmatprep.subr.mxu0 0.0
    %753 = vmatpush1.xpose.msra.mxu0 %v750
    %754 = vmatprep.subr.mxu0 0.0
    %755 = vmatpush1.xpose.msra.mxu0 0.0
    %756 = vmatprep.subr.mxu0 0.0
    %757 = vmatpush1.xpose.msra.mxu0 0.0
    %758 = vmatprep.subr.mxu0 0.0
    %759 = vmatpush1.xpose.msra.mxu0 0.0
    %760 = vmatprep.subr.mxu0 0.0
    %761 = vmatpush1.xpose.msra.mxu0 0.0
    %762 = vmatprep.subr.mxu0 0.0
    %763 = vmatpush1.xpose.msra.mxu0 0.0
    %764 = vmatprep.subr.mxu0 0.0
    %765 = vmatpush1.xpose.msra.mxu0 0.0
    %766 = vmatprep.subr.mxu0 0.0
    %767 = vmatpush1.xpose.msra.mxu0 0.0
    %768 = vmatprep.subr.mxu0 0.0
    %769 = vmatpush1.xpose.msra.mxu0 0.0
    %770 = vmatprep.subr.mxu0 0.0
    %771 = vmatpush1.xpose.msra.mxu0 0.0
    %772 = vmatprep.subr.mxu0 0.0
    %773 = vmatpush1.xpose.msra.mxu0 0.0
    %774 = vmatprep.subr.mxu0 0.0
    %775 = vmatpush1.xpose.msra.mxu0 0.0
    %776 = vmatprep.subr.mxu0 0.0
    %777 = vmatpush1.xpose.msra.mxu0 0.0
    %778 = vmatprep.subr.mxu0 0.0
    %779 = vmatpush1.xpose.msra.mxu0 0.0
    %780 = vmatprep.subr.mxu0 0.0
    %781 = vmatpush1.xpose.msra.mxu0 0.0
    %782 = vmatprep.subr.mxu0 0.0
    %783 = vmatpush1.xpose.msra.mxu0 0.0
    %784 = vmatprep.subr.mxu0 0.0
    %785 = vmatpush1.xpose.msra.mxu0 0.0
    %786 = vmatprep.subr.mxu0 0.0
    %787 = vmatpush1.xpose.msra.mxu0 0.0
    %788 = vmatprep.subr.mxu0 0.0
    %789 = vmatpush1.xpose.msra.mxu0 0.0
    %790 = vmatprep.subr.mxu0 0.0
    %791 = vmatpush1.xpose.msra.mxu0 0.0
    %792 = vmatprep.subr.mxu0 0.0
    %793 = vmatpush1.xpose.msra.mxu0 0.0
    %794 = vmatprep.subr.mxu0 0.0
    %795 = vmatpush1.xpose.msra.mxu0 0.0
    %796 = vmatprep.subr.mxu0 0.0
    %797 = vmatpush1.xpose.msra.mxu0 0.0
    %798 = vmatprep.subr.mxu0 0.0
    %799 = vmatpush1.xpose.msra.mxu0 0.0
    %800 = vmatprep.subr.mxu0 0.0
    %801 = vmatpush1.xpose.msra.mxu0 0.0
    %802 = vmatprep.subr.mxu0 0.0
    %803 = vmatpush1.xpose.msra.mxu0 0.0
    %804 = vmatprep.subr.mxu0 0.0
    %805 = vmatpush1.xpose.msra.mxu0 0.0
    %806 = vmatprep.subr.mxu0 0.0
    %807 = vmatpush1.xpose.msra.mxu0 0.0
    %808 = vmatprep.subr.mxu0 0.0
    %809 = vmatpush1.xpose.msra.mxu0 0.0
    %810 = vmatprep.subr.mxu0 0.0
    %811 = vmatpush1.xpose.msra.mxu0 0.0
    %812 = vmatprep.subr.mxu0 0.0
    %813 = vmatpush1.xpose.msra.mxu0 0.0
    %814 = vmatprep.subr.mxu0 0.0
    %815 = vmatpush1.xpose.msra.mxu0 0.0
    %816 = vmatprep.mubr.f32.mxu0 0.0
    %817 = vmatmul.mubr.f32.gmra.mrb[0].mxu0 %v748
    %v818 = vpop.f32.mrb[0].mxu0
    %v819 = vadd.f32 0.0, %v818
    %v820 = vpop.f32.mrb[0].mxu0
    %821 = vdwg.mxu0
    %v822 = vmul.f32 %v819, 0.35355338
    %v823 = vsel %vm247, %v822, -inf
    %824 = vmax.xlane.f32.xlu0 %v823
    %v825 = vpop.xlane.xlu0 %824
    %v826 = vsub.f32 %v822, %v825
    %v827 = vmul.f32 %v826, 1.442695
    %v828 = vpow.pop %v827
    %v829 = vsel %vm247, %v828, 0.0
    %830 = vadd.xlane.f32.xlu0 %v829
    %v831 = vpop.xlane.xlu0 %830
    %v832 = vrcp.pop %v831
    %v833 = vmul.f32 %v828, %v832
    %834 = vrot.lane.b32.xlu0 %v236, 40
    %v835 = vpop.permute.xlu0 %834
    %v838 = vsel %vm247, %v833, 0
    %840 = vmatprep.subr.mxu0 0.0
    %841 = vmatpush1.msra.mxu0 %v835
    %842 = vmatprep.subr.mxu0 0.0
    %843 = vmatpush1.msra.mxu0 0.0
    %844 = vmatprep.subr.mxu0 0.0
    %845 = vmatpush1.msra.mxu0 0.0
    %846 = vmatprep.subr.mxu0 0.0
    %847 = vmatpush1.msra.mxu0 0.0
    %848 = vmatprep.subr.mxu0 0.0
    %849 = vmatpush1.msra.mxu0 0.0
    %850 = vmatprep.subr.mxu0 0.0
    %851 = vmatpush1.msra.mxu0 0.0
    %852 = vmatprep.subr.mxu0 0.0
    %853 = vmatpush1.msra.mxu0 0.0
    %854 = vmatprep.subr.mxu0 0.0
    %855 = vmatpush1.msra.mxu0 0.0
    %856 = vmatprep.subr.mxu0 0.0
    %857 = vmatpush1.msra.mxu0 0.0
    %858 = vmatprep.subr.mxu0 0.0
    %859 = vmatpush1.msra.mxu0 0.0
    %860 = vmatprep.subr.mxu0 0.0
    %861 = vmatpush1.msra.mxu0 0.0
    %862 = vmatprep.subr.mxu0 0.0
    %863 = vmatpush1.msra.mxu0 0.0
    %864 = vmatprep.subr.mxu0 0.0
    %865 = vmatpush1.msra.mxu0 0.0
    %866 = vmatprep.subr.mxu0 0.0
    %867 = vmatpush1.msra.mxu0 0.0
    %868 = vmatprep.subr.mxu0 0.0
    %869 = vmatpush1.msra.mxu0 0.0
    %870 = vmatprep.subr.mxu0 0.0
    %871 = vmatpush1.msra.mxu0 0.0
    %872 = vmatprep.subr.mxu0 0.0
    %873 = vmatpush1.msra.mxu0 0.0
    %874 = vmatprep.subr.mxu0 0.0
    %875 = vmatpush1.msra.mxu0 0.0
    %876 = vmatprep.subr.mxu0 0.0
    %877 = vmatpush1.msra.mxu0 0.0
    %878 = vmatprep.subr.mxu0 0.0
    %879 = vmatpush1.msra.mxu0 0.0
    %880 = vmatprep.subr.mxu0 0.0
    %881 = vmatpush1.msra.mxu0 0.0
    %882 = vmatprep.subr.mxu0 0.0
    %883 = vmatpush1.msra.mxu0 0.0
    %884 = vmatprep.subr.mxu0 0.0
    %885 = vmatpush1.msra.mxu0 0.0
    %886 = vmatprep.subr.mxu0 0.0
    %887 = vmatpush1.msra.mxu0 0.0
    %888 = vmatprep.subr.mxu0 0.0
    %889 = vmatpush1.msra.mxu0 0.0
    %890 = vmatprep.subr.mxu0 0.0
    %891 = vmatpush1.msra.mxu0 0.0
    %892 = vmatprep.subr.mxu0 0.0
    %893 = vmatpush1.msra.mxu0 0.0
    %894 = vmatprep.subr.mxu0 0.0
    %895 = vmatpush1.msra.mxu0 0.0
    %896 = vmatprep.subr.mxu0 0.0
    %897 = vmatpush1.msra.mxu0 0.0
    %898 = vmatprep.subr.mxu0 0.0
    %899 = vmatpush1.msra.mxu0 0.0
    %900 = vmatprep.subr.mxu0 0.0
    %901 = vmatpush1.msra.mxu0 0.0
    %902 = vmatprep.subr.mxu0 0.0
    %903 = vmatpush1.msra.mxu0 0.0
    %904 = vmatprep.mubr.f32.mxu0 0.0
    %905 = vmatmul.mubr.f32.gmra.mrb[0].mxu0 %v838
    %v906 = vpop.f32.mrb[0].mxu0
    %v907 = vadd.f32 0.0, %v906
    %v908 = vpop.f32.mrb[0].mxu0
    %909 = vdwg.mxu0
    %911 = vrot.lane.b32.xlu0 %v575, 8
    %v912 = vpop.permute.xlu0 %911
    %915 = vrot.lane.b32.xlu0 %v741, 16
    %v916 = vpop.permute.xlu0 %915
    %919 = vrot.lane.b32.xlu0 %v907, 24
    %v920 = vpop.permute.xlu0 %919
    %v922 = vsel %vm247, %v409, %v912
    %vm923 = vcmask 130048
    %v924 = vsel %vm923, %v922, %v916
    %vm925 = vcmask 195584
    %v926 = vsel %vm925, %v924, %v920
    %928 = vrot.lane.b32.xlu0 %v231, 96
    %v929 = vpop.permute.xlu0 %928
    %v931 = vsel %vm247, %v221, 0
    %v933 = vsel %vm247, %v929, 0
    %935 = vmatprep.subr.mxu0 0.0
    %936 = vmatpush1.xpose.msra.mxu0 %v933
    %937 = vmatprep.subr.mxu0 0.0
    %938 = vmatpush1.xpose.msra.mxu0 0.0
    %939 = vmatprep.subr.mxu0 0.0
    %940 = vmatpush1.xpose.msra.mxu0 0.0
    %941 = vmatprep.subr.mxu0 0.0
    %942 = vmatpush1.xpose.msra.mxu0 0.0
    %943 = vmatprep.subr.mxu0 0.0
    %944 = vmatpush1.xpose.msra.mxu0 0.0
    %945 = vmatprep.subr.mxu0 0.0
    %946 = vmatpush1.xpose.msra.mxu0 0.0
    %947 = vmatprep.subr.mxu0 0.0
    %948 = vmatpush1.xpose.msra.mxu0 0.0
    %949 = vmatprep.subr.mxu0 0.0
    %950 = vmatpush1.xpose.msra.mxu0 0.0
    %951 = vmatprep.subr.mxu0 0.0
    %952 = vmatpush1.xpose.msra.mxu0 0.0
    %953 = vmatprep.subr.mxu0 0.0
    %954 = vmatpush1.xpose.msra.mxu0 0.0
    %955 = vmatprep.subr.mxu0 0.0
    %956 = vmatpush1.xpose.msra.mxu0 0.0
    %957 = vmatprep.subr.mxu0 0.0
    %958 = vmatpush1.xpose.msra.mxu0 0.0
    %959 = vmatprep.subr.mxu0 0.0
    %960 = vmatpush1.xpose.msra.mxu0 0.0
    %961 = vmatprep.subr.mxu0 0.0
    %962 = vmatpush1.xpose.msra.mxu0 0.0
    %963 = vmatprep.subr.mxu0 0.0
    %964 = vmatpush1.xpose.msra.mxu0 0.0
    %965 = vmatprep.subr.mxu0 0.0
    %966 = vmatpush1.xpose.msra.mxu0 0.0
    %967 = vmatprep.subr.mxu0 0.0
    %968 = vmatpush1.xpose.msra.mxu0 0.0
    %969 = vmatprep.subr.mxu0 0.0
    %970 = vmatpush1.xpose.msra.mxu0 0.0
    %971 = vmatprep.subr.mxu0 0.0
    %972 = vmatpush1.xpose.msra.mxu0 0.0
    %973 = vmatprep.subr.mxu0 0.0
    %974 = vmatpush1.xpose.msra.mxu0 0.0
    %975 = vmatprep.subr.mxu0 0.0
    %976 = vmatpush1.xpose.msra.mxu0 0.0
    %977 = vmatprep.subr.mxu0 0.0
    %978 = vmatpush1.xpose.msra.mxu0 0.0
    %979 = vmatprep.subr.mxu0 0.0
    %980 = vmatpush1.xpose.msra.mxu0 0.0
    %981 = vmatprep.subr.mxu0 0.0
    %982 = vmatpush1.xpose.msra.mxu0 0.0
    %983 = vmatprep.subr.mxu0 0.0
    %984 = vmatpush1.xpose.msra.mxu0 0.0
    %985 = vmatprep.subr.mxu0 0.0
    %986 = vmatpush1.xpose.msra.mxu0 0.0
    %987 = vmatprep.subr.mxu0 0.0
    %988 = vmatpush1.xpose.msra.mxu0 0.0
    %989 = vmatprep.subr.mxu0 0.0
    %990 = vmatpush1.xpose.msra.mxu0 0.0
    %991 = vmatprep.subr.mxu0 0.0
    %992 = vmatpush1.xpose.msra.mxu0 0.0
    %993 = vmatprep.subr.mxu0 0.0
    %994 = vmatpush1.xpose.msra.mxu0 0.0
    %995 = vmatprep.subr.mxu0 0.0
    %996 = vmatpush1.xpose.msra.mxu0 0.0
    %997 = vmatprep.subr.mxu0 0.0
    %998 = vmatpush1.xpose.msra.mxu0 0.0
    %999 = vmatprep.mubr.f32.mxu0 0.0
    %1000 = vmatmul.mubr.f32.gmra.mrb[0].mxu0 %v931
    %v1001 = vpop.f32.mrb[0].mxu0
    %v1002 = vadd.f32 0.0, %v1001
    %v1003 = vpop.f32.mrb[0].mxu0
    %1004 = vdwg.mxu0
    %v1005 = vmul.f32 %v1002, 0.35355338
    %v1006 = vsel %vm247, %v1005, -inf
    %1007 = vmax.xlane.f32.xlu0 %v1006
    %v1008 = vpop.xlane.xlu0 %1007
    %v1009 = vsub.f32 %v1005, %v1008
    %v1010 = vmul.f32 %v1009, 1.442695
    %v1011 = vpow.pop %v1010
    %v1012 = vsel %vm247, %v1011, 0.0
    %1013 = vadd.xlane.f32.xlu0 %v1012
    %v1014 = vpop.xlane.xlu0 %1013
    %v1015 = vrcp.pop %v1014
    %v1016 = vmul.f32 %v1011, %v1015
    %1018 = vrot.lane.b32.xlu0 %v241, 64
    %v1019 = vpop.permute.xlu0 %1018
    %v1022 = vsel %vm247, %v1016, 0
    %1024 = vmatprep.subr.mxu0 0.0
    %1025 = vmatpush1.msra.mxu0 %v1019
    %1026 = vmatprep.subr.mxu0 0.0
    %1027 = vmatpush1.msra.mxu0 0.0
    %1028 = vmatprep.subr.mxu0 0.0
    %1029 = vmatpush1.msra.mxu0 0.0
    %1030 = vmatprep.subr.mxu0 0.0
    %1031 = vmatpush1.msra.mxu0 0.0
    %1032 = vmatprep.subr.mxu0 0.0
    %1033 = vmatpush1.msra.mxu0 0.0
    %1034 = vmatprep.subr.mxu0 0.0
    %1035 = vmatpush1.msra.mxu0 0.0
    %1036 = vmatprep.subr.mxu0 0.0
    %1037 = vmatpush1.msra.mxu0 0.0
    %1038 = vmatprep.subr.mxu0 0.0
    %1039 = vmatpush1.msra.mxu0 0.0
    %1040 = vmatprep.subr.mxu0 0.0
    %1041 = vmatpush1.msra.mxu0 0.0
    %1042 = vmatprep.subr.mxu0 0.0
    %1043 = vmatpush1.msra.mxu0 0.0
    %1044 = vmatprep.subr.mxu0 0.0
    %1045 = vmatpush1.msra.mxu0 0.0
    %1046 = vmatprep.subr.mxu0 0.0
    %1047 = vmatpush1.msra.mxu0 0.0
    %1048 = vmatprep.subr.mxu0 0.0
    %1049 = vmatpush1.msra.mxu0 0.0
    %1050 = vmatprep.subr.mxu0 0.0
    %1051 = vmatpush1.msra.mxu0 0.0
    %1052 = vmatprep.subr.mxu0 0.0
    %1053 = vmatpush1.msra.mxu0 0.0
    %1054 = vmatprep.subr.mxu0 0.0
    %1055 = vmatpush1.msra.mxu0 0.0
    %1056 = vmatprep.subr.mxu0 0.0
    %1057 = vmatpush1.msra.mxu0 0.0
    %1058 = vmatprep.subr.mxu0 0.0
    %1059 = vmatpush1.msra.mxu0 0.0
    %1060 = vmatprep.subr.mxu0 0.0
    %1061 = vmatpush1.msra.mxu0 0.0
    %1062 = vmatprep.subr.mxu0 0.0
    %1063 = vmatpush1.msra.mxu0 0.0
    %1064 = vmatprep.subr.mxu0 0.0
    %1065 = vmatpush1.msra.mxu0 0.0
    %1066 = vmatprep.subr.mxu0 0.0
    %1067 = vmatpush1.msra.mxu0 0.0
    %1068 = vmatprep.subr.mxu0 0.0
    %1069 = vmatpush1.msra.mxu0 0.0
    %1070 = vmatprep.subr.mxu0 0.0
    %1071 = vmatpush1.msra.mxu0 0.0
    %1072 = vmatprep.subr.mxu0 0.0
    %1073 = vmatpush1.msra.mxu0 0.0
    %1074 = vmatprep.subr.mxu0 0.0
    %1075 = vmatpush1.msra.mxu0 0.0
    %1076 = vmatprep.subr.mxu0 0.0
    %1077 = vmatpush1.msra.mxu0 0.0
    %1078 = vmatprep.subr.mxu0 0.0
    %1079 = vmatpush1.msra.mxu0 0.0
    %1080 = vmatprep.subr.mxu0 0.0
    %1081 = vmatpush1.msra.mxu0 0.0
    %1082 = vmatprep.subr.mxu0 0.0
    %1083 = vmatpush1.msra.mxu0 0.0
    %1084 = vmatprep.subr.mxu0 0.0
    %1085 = vmatpush1.msra.mxu0 0.0
    %1086 = vmatprep.subr.mxu0 0.0
    %1087 = vmatpush1.msra.mxu0 0.0
    %1088 = vmatprep.mubr.f32.mxu0 0.0
    %1089 = vmatmul.mubr.f32.gmra.mrb[0].mxu0 %v1022
    %v1090 = vpop.f32.mrb[0].mxu0
    %v1091 = vadd.f32 0.0, %v1090
    %v1092 = vpop.f32.mrb[0].mxu0
    %1093 = vdwg.mxu0
    %1094 = vrot.lane.b32.xlu0 %v221, 120
    %v1095 = vpop.permute.xlu0 %1094
    %1096 = vrot.lane.b32.xlu0 %v231, 88
    %v1097 = vpop.permute.xlu0 %1096
    %v1098 = vsel %vm247, %v1095, 0
    %v1100 = vsel %vm247, %v1097, 0
    %1102 = vmatprep.subr.mxu0 0.0
    %1103 = vmatpush1.xpose.msra.mxu0 %v1100
    %1104 = vmatprep.subr.mxu0 0.0
    %1105 = vmatpush1.xpose.msra.mxu0 0.0
    %1106 = vmatprep.subr.mxu0 0.0
    %1107 = vmatpush1.xpose.msra.mxu0 0.0
    %1108 = vmatprep.subr.mxu0 0.0
    %1109 = vmatpush1.xpose.msra.mxu0 0.0
    %1110 = vmatprep.subr.mxu0 0.0
    %1111 = vmatpush1.xpose.msra.mxu0 0.0
    %1112 = vmatprep.subr.mxu0 0.0
    %1113 = vmatpush1.xpose.msra.mxu0 0.0
    %1114 = vmatprep.subr.mxu0 0.0
    %1115 = vmatpush1.xpose.msra.mxu0 0.0
    %1116 = vmatprep.subr.mxu0 0.0
    %1117 = vmatpush1.xpose.msra.mxu0 0.0
    %1118 = vmatprep.subr.mxu0 0.0
    %1119 = vmatpush1.xpose.msra.mxu0 0.0
    %1120 = vmatprep.subr.mxu0 0.0
    %1121 = vmatpush1.xpose.msra.mxu0 0.0
    %1122 = vmatprep.subr.mxu0 0.0
    %1123 = vmatpush1.xpose.msra.mxu0 0.0
    %1124 = vmatprep.subr.mxu0 0.0
    %1125 = vmatpush1.xpose.msra.mxu0 0.0
    %1126 = vmatprep.subr.mxu0 0.0
    %1127 = vmatpush1.xpose.msra.mxu0 0.0
    %1128 = vmatprep.subr.mxu0 0.0
    %1129 = vmatpush1.xpose.msra.mxu0 0.0
    %1130 = vmatprep.subr.mxu0 0.0
    %1131 = vmatpush1.xpose.msra.mxu0 0.0
    %1132 = vmatprep.subr.mxu0 0.0
    %1133 = vmatpush1.xpose.msra.mxu0 0.0
    %1134 = vmatprep.subr.mxu0 0.0
    %1135 = vmatpush1.xpose.msra.mxu0 0.0
    %1136 = vmatprep.subr.mxu0 0.0
    %1137 = vmatpush1.xpose.msra.mxu0 0.0
    %1138 = vmatprep.subr.mxu0 0.0
    %1139 = vmatpush1.xpose.msra.mxu0 0.0
    %1140 = vmatprep.subr.mxu0 0.0
    %1141 = vmatpush1.xpose.msra.mxu0 0.0
    %1142 = vmatprep.subr.mxu0 0.0
    %1143 = vmatpush1.xpose.msra.mxu0 0.0
    %1144 = vmatprep.subr.mxu0 0.0
    %1145 = vmatpush1.xpose.msra.mxu0 0.0
    %1146 = vmatprep.subr.mxu0 0.0
    %1147 = vmatpush1.xpose.msra.mxu0 0.0
    %1148 = vmatprep.subr.mxu0 0.0
    %1149 = vmatpush1.xpose.msra.mxu0 0.0
    %1150 = vmatprep.subr.mxu0 0.0
    %1151 = vmatpush1.xpose.msra.mxu0 0.0
    %1152 = vmatprep.subr.mxu0 0.0
    %1153 = vmatpush1.xpose.msra.mxu0 0.0
    %1154 = vmatprep.subr.mxu0 0.0
    %1155 = vmatpush1.xpose.msra.mxu0 0.0
    %1156 = vmatprep.subr.mxu0 0.0
    %1157 = vmatpush1.xpose.msra.mxu0 0.0
    %1158 = vmatprep.subr.mxu0 0.0
    %1159 = vmatpush1.xpose.msra.mxu0 0.0
    %1160 = vmatprep.subr.mxu0 0.0
    %1161 = vmatpush1.xpose.msra.mxu0 0.0
    %1162 = vmatprep.subr.mxu0 0.0
    %1163 = vmatpush1.xpose.msra.mxu0 0.0
    %1164 = vmatprep.subr.mxu0 0.0
    %1165 = vmatpush1.xpose.msra.mxu0 0.0
    %1166 = vmatprep.mubr.f32.mxu0 0.0
    %1167 = vmatmul.mubr.f32.gmra.mrb[0].mxu0 %v1098
    %v1168 = vpop.f32.mrb[0].mxu0
    %v1169 = vadd.f32 0.0, %v1168
    %v1170 = vpop.f32.mrb[0].mxu0
    %1171 = vdwg.mxu0
    %v1172 = vmul.f32 %v1169, 0.35355338
    %v1173 = vsel %vm247, %v1172, -inf
    %1174 = vmax.xlane.f32.xlu0 %v1173
    %v1175 = vpop.xlane.xlu0 %1174
    %v1176 = vsub.f32 %v1172, %v1175
    %v1177 = vmul.f32 %v1176, 1.442695
    %v1178 = vpow.pop %v1177
    %v1179 = vsel %vm247, %v1178, 0.0
    %1180 = vadd.xlane.f32.xlu0 %v1179
    %v1181 = vpop.xlane.xlu0 %1180
    %v1182 = vrcp.pop %v1181
    %v1183 = vmul.f32 %v1178, %v1182
    %1184 = vrot.lane.b32.xlu0 %v241, 56
    %v1185 = vpop.permute.xlu0 %1184
    %v1188 = vsel %vm247, %v1183, 0
    %1190 = vmatprep.subr.mxu0 0.0
    %1191 = vmatpush1.msra.mxu0 %v1185
    %1192 = vmatprep.subr.mxu0 0.0
    %1193 = vmatpush1.msra.mxu0 0.0
    %1194 = vmatprep.subr.mxu0 0.0
    %1195 = vmatpush1.msra.mxu0 0.0
    %1196 = vmatprep.subr.mxu0 0.0
    %1197 = vmatpush1.msra.mxu0 0.0
    %1198 = vmatprep.subr.mxu0 0.0
    %1199 = vmatpush1.msra.mxu0 0.0
    %1200 = vmatprep.subr.mxu0 0.0
    %1201 = vmatpush1.msra.mxu0 0.0
    %1202 = vmatprep.subr.mxu0 0.0
    %1203 = vmatpush1.msra.mxu0 0.0
    %1204 = vmatprep.subr.mxu0 0.0
    %1205 = vmatpush1.msra.mxu0 0.0
    %1206 = vmatprep.subr.mxu0 0.0
    %1207 = vmatpush1.msra.mxu0 0.0
    %1208 = vmatprep.subr.mxu0 0.0
    %1209 = vmatpush1.msra.mxu0 0.0
    %1210 = vmatprep.subr.mxu0 0.0
    %1211 = vmatpush1.msra.mxu0 0.0
    %1212 = vmatprep.subr.mxu0 0.0
    %1213 = vmatpush1.msra.mxu0 0.0
    %1214 = vmatprep.subr.mxu0 0.0
    %1215 = vmatpush1.msra.mxu0 0.0
    %1216 = vmatprep.subr.mxu0 0.0
    %1217 = vmatpush1.msra.mxu0 0.0
    %1218 = vmatprep.subr.mxu0 0.0
    %1219 = vmatpush1.msra.mxu0 0.0
    %1220 = vmatprep.subr.mxu0 0.0
    %1221 = vmatpush1.msra.mxu0 0.0
    %1222 = vmatprep.subr.mxu0 0.0
    %1223 = vmatpush1.msra.mxu0 0.0
    %1224 = vmatprep.subr.mxu0 0.0
    %1225 = vmatpush1.msra.mxu0 0.0
    %1226 = vmatprep.subr.mxu0 0.0
    %1227 = vmatpush1.msra.mxu0 0.0
    %1228 = vmatprep.subr.mxu0 0.0
    %1229 = vmatpush1.msra.mxu0 0.0
    %1230 = vmatprep.subr.mxu0 0.0
    %1231 = vmatpush1.msra.mxu0 0.0
    %1232 = vmatprep.subr.mxu0 0.0
    %1233 = vmatpush1.msra.mxu0 0.0
    %1234 = vmatprep.subr.mxu0 0.0
    %1235 = vmatpush1.msra.mxu0 0.0
    %1236 = vmatprep.subr.mxu0 0.0
    %1237 = vmatpush1.msra.mxu0 0.0
    %1238 = vmatprep.subr.mxu0 0.0
    %1239 = vmatpush1.msra.mxu0 0.0
    %1240 = vmatprep.subr.mxu0 0.0
    %1241 = vmatpush1.msra.mxu0 0.0
    %1242 = vmatprep.subr.mxu0 0.0
    %1243 = vmatpush1.msra.mxu0 0.0
    %1244 = vmatprep.subr.mxu0 0.0
    %1245 = vmatpush1.msra.mxu0 0.0
    %1246 = vmatprep.subr.mxu0 0.0
    %1247 = vmatpush1.msra.mxu0 0.0
    %1248 = vmatprep.subr.mxu0 0.0
    %1249 = vmatpush1.msra.mxu0 0.0
    %1250 = vmatprep.subr.mxu0 0.0
    %1251 = vmatpush1.msra.mxu0 0.0
    %1252 = vmatprep.subr.mxu0 0.0
    %1253 = vmatpush1.msra.mxu0 0.0
    %1254 = vmatprep.mubr.f32.mxu0 0.0
    %1255 = vmatmul.mubr.f32.gmra.mrb[0].mxu0 %v1188
    %v1256 = vpop.f32.mrb[0].mxu0
    %v1257 = vadd.f32 0.0, %v1256
    %v1258 = vpop.f32.mrb[0].mxu0
    %1259 = vdwg.mxu0
    %1260 = vrot.lane.b32.xlu0 %v221, 112
    %v1261 = vpop.permute.xlu0 %1260
    %1262 = vrot.lane.b32.xlu0 %v231, 80
    %v1263 = vpop.permute.xlu0 %1262
    %v1264 = vsel %vm247, %v1261, 0
    %v1266 = vsel %vm247, %v1263, 0
    %1268 = vmatprep.subr.mxu0 0.0
    %1269 = vmatpush1.xpose.msra.mxu0 %v1266
    %1270 = vmatprep.subr.mxu0 0.0
    %1271 = vmatpush1.xpose.msra.mxu0 0.0
    %1272 = vmatprep.subr.mxu0 0.0
    %1273 = vmatpush1.xpose.msra.mxu0 0.0
    %1274 = vmatprep.subr.mxu0 0.0
    %1275 = vmatpush1.xpose.msra.mxu0 0.0
    %1276 = vmatprep.subr.mxu0 0.0
    %1277 = vmatpush1.xpose.msra.mxu0 0.0
    %1278 = vmatprep.subr.mxu0 0.0
    %1279 = vmatpush1.xpose.msra.mxu0 0.0
    %1280 = vmatprep.subr.mxu0 0.0
    %1281 = vmatpush1.xpose.msra.mxu0 0.0
    %1282 = vmatprep.subr.mxu0 0.0
    %1283 = vmatpush1.xpose.msra.mxu0 0.0
    %1284 = vmatprep.subr.mxu0 0.0
    %1285 = vmatpush1.xpose.msra.mxu0 0.0
    %1286 = vmatprep.subr.mxu0 0.0
    %1287 = vmatpush1.xpose.msra.mxu0 0.0
    %1288 = vmatprep.subr.mxu0 0.0
    %1289 = vmatpush1.xpose.msra.mxu0 0.0
    %1290 = vmatprep.subr.mxu0 0.0
    %1291 = vmatpush1.xpose.msra.mxu0 0.0
    %1292 = vmatprep.subr.mxu0 0.0
    %1293 = vmatpush1.xpose.msra.mxu0 0.0
    %1294 = vmatprep.subr.mxu0 0.0
    %1295 = vmatpush1.xpose.msra.mxu0 0.0
    %1296 = vmatprep.subr.mxu0 0.0
    %1297 = vmatpush1.xpose.msra.mxu0 0.0
    %1298 = vmatprep.subr.mxu0 0.0
    %1299 = vmatpush1.xpose.msra.mxu0 0.0
    %1300 = vmatprep.subr.mxu0 0.0
    %1301 = vmatpush1.xpose.msra.mxu0 0.0
    %1302 = vmatprep.subr.mxu0 0.0
    %1303 = vmatpush1.xpose.msra.mxu0 0.0
    %1304 = vmatprep.subr.mxu0 0.0
    %1305 = vmatpush1.xpose.msra.mxu0 0.0
    %1306 = vmatprep.subr.mxu0 0.0
    %1307 = vmatpush1.xpose.msra.mxu0 0.0
    %1308 = vmatprep.subr.mxu0 0.0
    %1309 = vmatpush1.xpose.msra.mxu0 0.0
    %1310 = vmatprep.subr.mxu0 0.0
    %1311 = vmatpush1.xpose.msra.mxu0 0.0
    %1312 = vmatprep.subr.mxu0 0.0
    %1313 = vmatpush1.xpose.msra.mxu0 0.0
    %1314 = vmatprep.subr.mxu0 0.0
    %1315 = vmatpush1.xpose.msra.mxu0 0.0
    %1316 = vmatprep.subr.mxu0 0.0
    %1317 = vmatpush1.xpose.msra.mxu0 0.0
    %1318 = vmatprep.subr.mxu0 0.0
    %1319 = vmatpush1.xpose.msra.mxu0 0.0
    %1320 = vmatprep.subr.mxu0 0.0
    %1321 = vmatpush1.xpose.msra.mxu0 0.0
    %1322 = vmatprep.subr.mxu0 0.0
    %1323 = vmatpush1.xpose.msra.mxu0 0.0
    %1324 = vmatprep.subr.mxu0 0.0
    %1325 = vmatpush1.xpose.msra.mxu0 0.0
    %1326 = vmatprep.subr.mxu0 0.0
    %1327 = vmatpush1.xpose.msra.mxu0 0.0
    %1328 = vmatprep.subr.mxu0 0.0
    %1329 = vmatpush1.xpose.msra.mxu0 0.0
    %1330 = vmatprep.subr.mxu0 0.0
    %1331 = vmatpush1.xpose.msra.mxu0 0.0
    %1332 = vmatprep.mubr.f32.mxu0 0.0
    %1333 = vmatmul.mubr.f32.gmra.mrb[0].mxu0 %v1264
    %v1334 = vpop.f32.mrb[0].mxu0
    %v1335 = vadd.f32 0.0, %v1334
    %v1336 = vpop.f32.mrb[0].mxu0
    %1337 = vdwg.mxu0
    %v1338 = vmul.f32 %v1335, 0.35355338
    %v1339 = vsel %vm247, %v1338, -inf
    %1340 = vmax.xlane.f32.xlu0 %v1339
    %v1341 = vpop.xlane.xlu0 %1340
    %v1342 = vsub.f32 %v1338, %v1341
    %v1343 = vmul.f32 %v1342, 1.442695
    %v1344 = vpow.pop %v1343
    %v1345 = vsel %vm247, %v1344, 0.0
    %1346 = vadd.xlane.f32.xlu0 %v1345
    %v1347 = vpop.xlane.xlu0 %1346
    %v1348 = vrcp.pop %v1347
    %v1349 = vmul.f32 %v1344, %v1348
    %1350 = vrot.lane.b32.xlu0 %v241, 48
    %v1351 = vpop.permute.xlu0 %1350
    %v1354 = vsel %vm247, %v1349, 0
    %1356 = vmatprep.subr.mxu0 0.0
    %1357 = vmatpush1.msra.mxu0 %v1351
    %1358 = vmatprep.subr.mxu0 0.0
    %1359 = vmatpush1.msra.mxu0 0.0
    %1360 = vmatprep.subr.mxu0 0.0
    %1361 = vmatpush1.msra.mxu0 0.0
    %1362 = vmatprep.subr.mxu0 0.0
    %1363 = vmatpush1.msra.mxu0 0.0
    %1364 = vmatprep.subr.mxu0 0.0
    %1365 = vmatpush1.msra.mxu0 0.0
    %1366 = vmatprep.subr.mxu0 0.0
    %1367 = vmatpush1.msra.mxu0 0.0
    %1368 = vmatprep.subr.mxu0 0.0
    %1369 = vmatpush1.msra.mxu0 0.0
    %1370 = vmatprep.subr.mxu0 0.0
    %1371 = vmatpush1.msra.mxu0 0.0
    %1372 = vmatprep.subr.mxu0 0.0
    %1373 = vmatpush1.msra.mxu0 0.0
    %1374 = vmatprep.subr.mxu0 0.0
    %1375 = vmatpush1.msra.mxu0 0.0
    %1376 = vmatprep.subr.mxu0 0.0
    %1377 = vmatpush1.msra.mxu0 0.0
    %1378 = vmatprep.subr.mxu0 0.0
    %1379 = vmatpush1.msra.mxu0 0.0
    %1380 = vmatprep.subr.mxu0 0.0
    %1381 = vmatpush1.msra.mxu0 0.0
    %1382 = vmatprep.subr.mxu0 0.0
    %1383 = vmatpush1.msra.mxu0 0.0
    %1384 = vmatprep.subr.mxu0 0.0
    %1385 = vmatpush1.msra.mxu0 0.0
    %1386 = vmatprep.subr.mxu0 0.0
    %1387 = vmatpush1.msra.mxu0 0.0
    %1388 = vmatprep.subr.mxu0 0.0
    %1389 = vmatpush1.msra.mxu0 0.0
    %1390 = vmatprep.subr.mxu0 0.0
    %1391 = vmatpush1.msra.mxu0 0.0
    %1392 = vmatprep.subr.mxu0 0.0
    %1393 = vmatpush1.msra.mxu0 0.0
    %1394 = vmatprep.subr.mxu0 0.0
    %1395 = vmatpush1.msra.mxu0 0.0
    %1396 = vmatprep.subr.mxu0 0.0
    %1397 = vmatpush1.msra.mxu0 0.0
    %1398 = vmatprep.subr.mxu0 0.0
    %1399 = vmatpush1.msra.mxu0 0.0
    %1400 = vmatprep.subr.mxu0 0.0
    %1401 = vmatpush1.msra.mxu0 0.0
    %1402 = vmatprep.subr.mxu0 0.0
    %1403 = vmatpush1.msra.mxu0 0.0
    %1404 = vmatprep.subr.mxu0 0.0
    %1405 = vmatpush1.msra.mxu0 0.0
    %1406 = vmatprep.subr.mxu0 0.0
    %1407 = vmatpush1.msra.mxu0 0.0
    %1408 = vmatprep.subr.mxu0 0.0
    %1409 = vmatpush1.msra.mxu0 0.0
    %1410 = vmatprep.subr.mxu0 0.0
    %1411 = vmatpush1.msra.mxu0 0.0
    %1412 = vmatprep.subr.mxu0 0.0
    %1413 = vmatpush1.msra.mxu0 0.0
    %1414 = vmatprep.subr.mxu0 0.0
    %1415 = vmatpush1.msra.mxu0 0.0
    %1416 = vmatprep.subr.mxu0 0.0
    %1417 = vmatpush1.msra.mxu0 0.0
    %1418 = vmatprep.subr.mxu0 0.0
    %1419 = vmatpush1.msra.mxu0 0.0
    %1420 = vmatprep.mubr.f32.mxu0 0.0
    %1421 = vmatmul.mubr.f32.gmra.mrb[0].mxu0 %v1354
    %v1422 = vpop.f32.mrb[0].mxu0
    %v1423 = vadd.f32 0.0, %v1422
    %v1424 = vpop.f32.mrb[0].mxu0
    %1425 = vdwg.mxu0
    %1426 = vrot.lane.b32.xlu0 %v221, 104
    %v1427 = vpop.permute.xlu0 %1426
    %1428 = vrot.lane.b32.xlu0 %v231, 72
    %v1429 = vpop.permute.xlu0 %1428
    %v1430 = vsel %vm247, %v1427, 0
    %v1432 = vsel %vm247, %v1429, 0
    %1434 = vmatprep.subr.mxu0 0.0
    %1435 = vmatpush1.xpose.msra.mxu0 %v1432
    %1436 = vmatprep.subr.mxu0 0.0
    %1437 = vmatpush1.xpose.msra.mxu0 0.0
    %1438 = vmatprep.subr.mxu0 0.0
    %1439 = vmatpush1.xpose.msra.mxu0 0.0
    %1440 = vmatprep.subr.mxu0 0.0
    %1441 = vmatpush1.xpose.msra.mxu0 0.0
    %1442 = vmatprep.subr.mxu0 0.0
    %1443 = vmatpush1.xpose.msra.mxu0 0.0
    %1444 = vmatprep.subr.mxu0 0.0
    %1445 = vmatpush1.xpose.msra.mxu0 0.0
    %1446 = vmatprep.subr.mxu0 0.0
    %1447 = vmatpush1.xpose.msra.mxu0 0.0
    %1448 = vmatprep.subr.mxu0 0.0
    %1449 = vmatpush1.xpose.msra.mxu0 0.0
    %1450 = vmatprep.subr.mxu0 0.0
    %1451 = vmatpush1.xpose.msra.mxu0 0.0
    %1452 = vmatprep.subr.mxu0 0.0
    %1453 = vmatpush1.xpose.msra.mxu0 0.0
    %1454 = vmatprep.subr.mxu0 0.0
    %1455 = vmatpush1.xpose.msra.mxu0 0.0
    %1456 = vmatprep.subr.mxu0 0.0
    %1457 = vmatpush1.xpose.msra.mxu0 0.0
    %1458 = vmatprep.subr.mxu0 0.0
    %1459 = vmatpush1.xpose.msra.mxu0 0.0
    %1460 = vmatprep.subr.mxu0 0.0
    %1461 = vmatpush1.xpose.msra.mxu0 0.0
    %1462 = vmatprep.subr.mxu0 0.0
    %1463 = vmatpush1.xpose.msra.mxu0 0.0
    %1464 = vmatprep.subr.mxu0 0.0
    %1465 = vmatpush1.xpose.msra.mxu0 0.0
    %1466 = vmatprep.subr.mxu0 0.0
    %1467 = vmatpush1.xpose.msra.mxu0 0.0
    %1468 = vmatprep.subr.mxu0 0.0
    %1469 = vmatpush1.xpose.msra.mxu0 0.0
    %1470 = vmatprep.subr.mxu0 0.0
    %1471 = vmatpush1.xpose.msra.mxu0 0.0
    %1472 = vmatprep.subr.mxu0 0.0
    %1473 = vmatpush1.xpose.msra.mxu0 0.0
    %1474 = vmatprep.subr.mxu0 0.0
    %1475 = vmatpush1.xpose.msra.mxu0 0.0
    %1476 = vmatprep.subr.mxu0 0.0
    %1477 = vmatpush1.xpose.msra.mxu0 0.0
    %1478 = vmatprep.subr.mxu0 0.0
    %1479 = vmatpush1.xpose.msra.mxu0 0.0
    %1480 = vmatprep.subr.mxu0 0.0
    %1481 = vmatpush1.xpose.msra.mxu0 0.0
    %1482 = vmatprep.subr.mxu0 0.0
    %1483 = vmatpush1.xpose.msra.mxu0 0.0
    %1484 = vmatprep.subr.mxu0 0.0
    %1485 = vmatpush1.xpose.msra.mxu0 0.0
    %1486 = vmatprep.subr.mxu0 0.0
    %1487 = vmatpush1.xpose.msra.mxu0 0.0
    %1488 = vmatprep.subr.mxu0 0.0
    %1489 = vmatpush1.xpose.msra.mxu0 0.0
    %1490 = vmatprep.subr.mxu0 0.0
    %1491 = vmatpush1.xpose.msra.mxu0 0.0
    %1492 = vmatprep.subr.mxu0 0.0
    %1493 = vmatpush1.xpose.msra.mxu0 0.0
    %1494 = vmatprep.subr.mxu0 0.0
    %1495 = vmatpush1.xpose.msra.mxu0 0.0
    %1496 = vmatprep.subr.mxu0 0.0
    %1497 = vmatpush1.xpose.msra.mxu0 0.0
    %1498 = vmatprep.mubr.f32.mxu0 0.0
    %1499 = vmatmul.mubr.f32.gmra.mrb[0].mxu0 %v1430
    %v1500 = vpop.f32.mrb[0].mxu0
    %v1501 = vadd.f32 0.0, %v1500
    %v1502 = vpop.f32.mrb[0].mxu0
    %1503 = vdwg.mxu0
    %v1504 = vmul.f32 %v1501, 0.35355338
    %v1505 = vsel %vm247, %v1504, -inf
    %1506 = vmax.xlane.f32.xlu0 %v1505
    %v1507 = vpop.xlane.xlu0 %1506
    %v1508 = vsub.f32 %v1504, %v1507
    %v1509 = vmul.f32 %v1508, 1.442695
    %v1510 = vpow.pop %v1509
    %v1511 = vsel %vm247, %v1510, 0.0
    %1512 = vadd.xlane.f32.xlu0 %v1511
    %v1513 = vpop.xlane.xlu0 %1512
    %v1514 = vrcp.pop %v1513
    %v1515 = vmul.f32 %v1510, %v1514
    %1516 = vrot.lane.b32.xlu0 %v241, 40
    %v1517 = vpop.permute.xlu0 %1516
    %v1520 = vsel %vm247, %v1515, 0
    %1522 = vmatprep.subr.mxu0 0.0
    %1523 = vmatpush1.msra.mxu0 %v1517
    %1524 = vmatprep.subr.mxu0 0.0
    %1525 = vmatpush1.msra.mxu0 0.0
    %1526 = vmatprep.subr.mxu0 0.0
    %1527 = vmatpush1.msra.mxu0 0.0
    %1528 = vmatprep.subr.mxu0 0.0
    %1529 = vmatpush1.msra.mxu0 0.0
    %1530 = vmatprep.subr.mxu0 0.0
    %1531 = vmatpush1.msra.mxu0 0.0
    %1532 = vmatprep.subr.mxu0 0.0
    %1533 = vmatpush1.msra.mxu0 0.0
    %1534 = vmatprep.subr.mxu0 0.0
    %1535 = vmatpush1.msra.mxu0 0.0
    %1536 = vmatprep.subr.mxu0 0.0
    %1537 = vmatpush1.msra.mxu0 0.0
    %1538 = vmatprep.subr.mxu0 0.0
    %1539 = vmatpush1.msra.mxu0 0.0
    %1540 = vmatprep.subr.mxu0 0.0
    %1541 = vmatpush1.msra.mxu0 0.0
    %1542 = vmatprep.subr.mxu0 0.0
    %1543 = vmatpush1.msra.mxu0 0.0
    %1544 = vmatprep.subr.mxu0 0.0
    %1545 = vmatpush1.msra.mxu0 0.0
    %1546 = vmatprep.subr.mxu0 0.0
    %1547 = vmatpush1.msra.mxu0 0.0
    %1548 = vmatprep.subr.mxu0 0.0
    %1549 = vmatpush1.msra.mxu0 0.0
    %1550 = vmatprep.subr.mxu0 0.0
    %1551 = vmatpush1.msra.mxu0 0.0
    %1552 = vmatprep.subr.mxu0 0.0
    %1553 = vmatpush1.msra.mxu0 0.0
    %1554 = vmatprep.subr.mxu0 0.0
    %1555 = vmatpush1.msra.mxu0 0.0
    %1556 = vmatprep.subr.mxu0 0.0
    %1557 = vmatpush1.msra.mxu0 0.0
    %1558 = vmatprep.subr.mxu0 0.0
    %1559 = vmatpush1.msra.mxu0 0.0
    %1560 = vmatprep.subr.mxu0 0.0
    %1561 = vmatpush1.msra.mxu0 0.0
    %1562 = vmatprep.subr.mxu0 0.0
    %1563 = vmatpush1.msra.mxu0 0.0
    %1564 = vmatprep.subr.mxu0 0.0
    %1565 = vmatpush1.msra.mxu0 0.0
    %1566 = vmatprep.subr.mxu0 0.0
    %1567 = vmatpush1.msra.mxu0 0.0
    %1568 = vmatprep.subr.mxu0 0.0
    %1569 = vmatpush1.msra.mxu0 0.0
    %1570 = vmatprep.subr.mxu0 0.0
    %1571 = vmatpush1.msra.mxu0 0.0
    %1572 = vmatprep.subr.mxu0 0.0
    %1573 = vmatpush1.msra.mxu0 0.0
    %1574 = vmatprep.subr.mxu0 0.0
    %1575 = vmatpush1.msra.mxu0 0.0
    %1576 = vmatprep.subr.mxu0 0.0
    %1577 = vmatpush1.msra.mxu0 0.0
    %1578 = vmatprep.subr.mxu0 0.0
    %1579 = vmatpush1.msra.mxu0 0.0
    %1580 = vmatprep.subr.mxu0 0.0
    %1581 = vmatpush1.msra.mxu0 0.0
    %1582 = vmatprep.subr.mxu0 0.0
    %1583 = vmatpush1.msra.mxu0 0.0
    %1584 = vmatprep.subr.mxu0 0.0
    %1585 = vmatpush1.msra.mxu0 0.0
    %1586 = vmatprep.mubr.f32.mxu0 0.0
    %1587 = vmatmul.mubr.f32.gmra.mrb[0].mxu0 %v1520
    %v1588 = vpop.f32.mrb[0].mxu0
    %v1589 = vadd.f32 0.0, %v1588
    %v1590 = vpop.f32.mrb[0].mxu0
    %1591 = vdwg.mxu0
    %1593 = vrot.lane.b32.xlu0 %v1257, 8
    %v1594 = vpop.permute.xlu0 %1593
    %1597 = vrot.lane.b32.xlu0 %v1423, 16
    %v1598 = vpop.permute.xlu0 %1597
    %1601 = vrot.lane.b32.xlu0 %v1589, 24
    %v1602 = vpop.permute.xlu0 %1601
    %v1604 = vsel %vm247, %v1091, %v1594
    %v1605 = vsel %vm923, %v1604, %v1598
    %v1606 = vsel %vm925, %v1605, %v1602
    %v1607 = vlaneseq
    %v1608 = vshrl.u32 %v1607, 7
    %v1609 = vsub.s32 0, %v1608
    %v1610 = vrot.slane %v80, %v1609
    %1615 = vrot.lane.b32.xlu0 %v73, 32
    %v1616 = vpop.permute.xlu0 %1615
    %1617 = vrot.lane.b32.xlu0 %v74, 32
    %v1618 = vpop.permute.xlu0 %1617
    %1619 = vrot.lane.b32.xlu0 %v75, 32
    %v1620 = vpop.permute.xlu0 %1619
    %1621 = vrot.lane.b32.xlu0 %v76, 32
    %v1622 = vpop.permute.xlu0 %1621
    %v1628 = vsel %vm87, %v926, 0
    %v1631 = vsel %vm87, %v1606, 0
    %1633 = vmatprep.subr.mxu0 0.0
    %1634 = vmatpush1.msra.mxu0 %v1616
    %1635 = vmatprep.subr.mxu0 0.0
    %1636 = vmatpush1.msra.mxu0 %v1618
    %1637 = vmatprep.subr.mxu0 0.0
    %1638 = vmatpush1.msra.mxu0 %v1620
    %1639 = vmatprep.subr.mxu0 0.0
    %1640 = vmatpush1.msra.mxu0 %v1622
    %1641 = vmatprep.subr.mxu0 0.0
    %1642 = vmatpush1.msra.mxu0 0.0
    %1643 = vmatprep.subr.mxu0 0.0
    %1644 = vmatpush1.msra.mxu0 0.0
    %1645 = vmatprep.subr.mxu0 0.0
    %1646 = vmatpush1.msra.mxu0 0.0
    %1647 = vmatprep.subr.mxu0 0.0
    %1648 = vmatpush1.msra.mxu0 0.0
    %1649 = vmatprep.subr.mxu0 0.0
    %1650 = vmatpush1.msra.mxu0 0.0
    %1651 = vmatprep.subr.mxu0 0.0
    %1652 = vmatpush1.msra.mxu0 0.0
    %1653 = vmatprep.subr.mxu0 0.0
    %1654 = vmatpush1.msra.mxu0 0.0
    %1655 = vmatprep.subr.mxu0 0.0
    %1656 = vmatpush1.msra.mxu0 0.0
    %1657 = vmatprep.subr.mxu0 0.0
    %1658 = vmatpush1.msra.mxu0 0.0
    %1659 = vmatprep.subr.mxu0 0.0
    %1660 = vmatpush1.msra.mxu0 0.0
    %1661 = vmatprep.subr.mxu0 0.0
    %1662 = vmatpush1.msra.mxu0 0.0
    %1663 = vmatprep.subr.mxu0 0.0
    %1664 = vmatpush1.msra.mxu0 0.0
    %1665 = vmatprep.subr.mxu0 0.0
    %1666 = vmatpush1.msra.mxu0 0.0
    %1667 = vmatprep.subr.mxu0 0.0
    %1668 = vmatpush1.msra.mxu0 0.0
    %1669 = vmatprep.subr.mxu0 0.0
    %1670 = vmatpush1.msra.mxu0 0.0
    %1671 = vmatprep.subr.mxu0 0.0
    %1672 = vmatpush1.msra.mxu0 0.0
    %1673 = vmatprep.subr.mxu0 0.0
    %1674 = vmatpush1.msra.mxu0 0.0
    %1675 = vmatprep.subr.mxu0 0.0
    %1676 = vmatpush1.msra.mxu0 0.0
    %1677 = vmatprep.subr.mxu0 0.0
    %1678 = vmatpush1.msra.mxu0 0.0
    %1679 = vmatprep.subr.mxu0 0.0
    %1680 = vmatpush1.msra.mxu0 0.0
    %1681 = vmatprep.subr.mxu0 0.0
    %1682 = vmatpush1.msra.mxu0 0.0
    %1683 = vmatprep.subr.mxu0 0.0
    %1684 = vmatpush1.msra.mxu0 0.0
    %1685 = vmatprep.subr.mxu0 0.0
    %1686 = vmatpush1.msra.mxu0 0.0
    %1687 = vmatprep.subr.mxu0 0.0
    %1688 = vmatpush1.msra.mxu0 0.0
    %1689 = vmatprep.subr.mxu0 0.0
    %1690 = vmatpush1.msra.mxu0 0.0
    %1691 = vmatprep.subr.mxu0 0.0
    %1692 = vmatpush1.msra.mxu0 0.0
    %1693 = vmatprep.subr.mxu0 0.0
    %1694 = vmatpush1.msra.mxu0 0.0
    %1695 = vmatprep.subr.mxu0 0.0
    %1696 = vmatpush1.msra.mxu0 0.0
    %1697 = vmatprep.mubr.f32.mxu0 0.0
    %1698 = vmatmul.mubr.f32.gmra.mrb[0].mxu0 %v1628
    %v1699 = vpop.f32.mrb[0].mxu0
    %v1700 = vadd.f32 %v1610, %v1699
    %v1701 = vpop.f32.mrb[0].mxu0
    %1702 = vmatprep.mubr.f32.mxu0 0.0
    %1703 = vmatmul.mubr.f32.gmra.mrb[0].mxu0 %v1631
    %v1704 = vpop.f32.mrb[0].mxu0
    %v1705 = vadd.f32 %v1610, %v1704
    %v1706 = vpop.f32.mrb[0].mxu0
    %1707 = vdwg.mxu0
    %1708 = vst.msk [vmem:[#allocation10] sm:$0xff] %vm87, %v1700
    %1709 = vst.msk [vmem:[#allocation10 + $0x8] sm:$0xff] %vm87, %v1705
    // Predicated region
    $region34: #{mhca_pallas.1} parent=1 // pred_check
      _
    $region35: #{mhca_pallas.1} parent=1 // pred_check_branch
      %1711 = sbr.rel (0) target = $region37
    $region36: #{mhca_pallas.1} parent=1 // pred_region
      %s1713 = ssub.s32 256, 256
      %1714 = vsyncadd [#allocation4], %s1713
      %s1715 = sshll.u32 [#allocation10], 4
      %s1716 = int_to_ptr.vmem [resolvable:$true] %s1715
      %1721 = dma.vmem_to_hbm [thread:$0]  %s1716, 256, %s4, [#allocation4], 128, 128, 8
    $region37: #{mhca_pallas.1} parent=1 // pred_fallthru
      _
    // Predicated region
    $region38: #{mhca_pallas.1} parent=1 // pred_check
      _
    $region39: #{mhca_pallas.1} parent=1 // pred_check_branch
      %1723 = sbr.rel (0) target = $region41
    $region40: #{mhca_pallas.1} parent=1 // pred_region
      %1724 = dma.done [#allocation4], 256
    $region41: #{mhca_pallas.1} parent=1 // pred_fallthru
      _
    %1725 = vsyncpa [#allocation3], 1
    %1726 = vsyncpa [#allocation6], 1
    %1727 = vsyncpa [#allocation9], 1
    %1728 = vsyncpa [#allocation4], 1

</llo_original>
